<compile_context>
chip_gen: v6e
topology: v6e:2x2x1
jax: 0.10.0
libtpu: 0.0.40
codegen_flags: <defaults>
</compile_context>

<pallas_src>
import math

import jax
import jax.numpy as jnp
from jax import lax
from jax.experimental import pallas as pl
from jax.experimental.pallas import tpu as pltpu


def _pos_emb_kernel(xt_ref, w_ref, out_ref):
    # xt_ref: (KP, TR) f32 — rows 0..G-1: packed neighbor indices (transposed),
    #                          row G: ones (phase carrier), rows G+1..KP-1: zeros.
    # w_ref:  (KP, LW) f32 — W[g, l] = freq_full[l % D] if l // D == g else 0,
    #                          W[G, l] = pi/2 on the cos half / 0 on the sin half.
    # out_ref:(TR, LW)
    ang = lax.dot_general(
        xt_ref[...], w_ref[...],
        dimension_numbers=(((0,), (0,)), ((), ())),      # lhs.T @ rhs (contract sublane dim)
        precision=lax.Precision.HIGHEST,                 # full f32 fidelity for idx * freq
        preferred_element_type=jnp.float32)
    out_ref[...] = jnp.sin(ang).astype(out_ref.dtype)    # cos half handled by +pi/2 phase


def pos_embedding(E_idx, num_embeddings, *, tile_rows=4096, out_dtype=jnp.float32):
    """E_idx: (B, L, K) (any real/int dtype); returns (B, L, K, num_embeddings) out_dtype."""
    D = num_embeddings
    assert D % 2 == 0 and D >= 2
    B, L, K = E_idx.shape
    N = B * L * K
    H = D // 2

    # ---- lane-dense packing: G embedding rows per LW-wide slab row ----------------
    lcm = D * 128 // math.gcd(D, 128)
    if lcm <= 512:
        G, LW = lcm // D, lcm
    else:
        G, LW = 1, D  # rare D that doesn't pack into <=512 lanes (masked stores)

    KP = ((G + 1 + 7) // 8) * 8  # contraction dim (G idx rows + 1 phase row), padded to 8

    # Pad flat index list to a multiple of G (keeps stores lane-dense for ragged N).
    Np = N + ((-N) % G)
    rows = Np // G
    flat = E_idx.reshape(-1).astype(jnp.float32)
    if Np != N:
        flat = jnp.pad(flat, (0, Np - N))

    # Transposed, augmented index operand: (KP, rows).  Contiguous DMA rows, tiny VMEM block.
    xg = flat.reshape(rows, G).T                              # (G, rows)
    parts = [xg, jnp.ones((1, rows), jnp.float32)]
    if KP - (G + 1) > 0:
        parts.append(jnp.zeros((KP - (G + 1), rows), jnp.float32))
    xt = jnp.concatenate(parts, axis=0)                       # (KP, rows)

    # Fused frequency / phase weight matrix W: ang = xt.T @ W.
    freq = jnp.exp(jnp.arange(0, D, 2, dtype=jnp.float32) * (-(math.log(10000.0) / D)))
    freq_full = jnp.concatenate([freq, freq])                                   # (D,)
    phase_full = jnp.concatenate([jnp.full((H,), jnp.pi / 2, jnp.float32),
                                  jnp.zeros((H,), jnp.float32)])                # (D,)
    lane_grp = jnp.arange(LW, dtype=jnp.int32) // D                             # (LW,)
    freq_tiled = jnp.tile(freq_full, G)                                         # (LW,)
    phase_tiled = jnp.tile(phase_full, G)                                       # (LW,)
    Wg = jnp.where(lane_grp[None, :] == jnp.arange(G, dtype=jnp.int32)[:, None],
                   freq_tiled[None, :], 0.0)                                    # (G, LW)
    w_parts = [Wg, phase_tiled[None, :]]
    if KP - (G + 1) > 0:
        w_parts.append(jnp.zeros((KP - (G + 1), LW), jnp.float32))
    W = jnp.concatenate(w_parts, axis=0)                                        # (KP, LW)

    # ---- row-tile sizing ------------------------------------------------------------
    tr = min(tile_rows, rows, 8192)          # VMEM guard: <=8192 keeps ~8.5 MiB working set
    if rows >= 256 and 2 * tr > rows:        # guarantee >=2 grid steps when there's enough
        tr = rows // 2                       # work (v7x megacore + cross-step pipelining)
    tr = max(tr - (tr % 128), 128)           # idx-block lane dim & (8,128) alignment

    pad_rows = (-rows) % tr
    rows_p = rows + pad_rows
    if pad_rows:
        xt = jnp.pad(xt, ((0, 0), (0, pad_rows)))

    out = pl.pallas_call(
        _pos_emb_kernel,
        out_shape=jax.ShapeDtypeStruct((rows_p, LW), out_dtype),
        grid_spec=pltpu.PrefetchScalarGridSpec(
            num_scalar_prefetch=0,
            grid=(rows_p // tr,),
            in_specs=[
                pl.BlockSpec((KP, tr), lambda i: (0, i)),   # transposed idx block
                pl.BlockSpec((KP, LW), lambda i: (0, 0)),   # fused freq/phase weights
            ],
            out_specs=pl.BlockSpec((tr, LW), lambda i: (i, 0)),
        ),
        compiler_params=pltpu.CompilerParams(
            dimension_semantics=("parallel",)),
    )(xt, W)

    # (rows_p, G*D) -> (rows_p*G, D) is a free row-major view; slice off padding rows.
    return out.reshape(rows_p * G, D)[:N].reshape(B, L, K, D)


def _reference(E_idx, num_embeddings):
    D = num_embeddings
    freq = jnp.exp(jnp.arange(0, D, 2, dtype=jnp.float32) * (-(math.log(10000.0) / D)))
    angles = E_idx.astype(jnp.float32)[..., None] * freq.reshape(1, 1, 1, -1)
    return jnp.concatenate([jnp.cos(angles), jnp.sin(angles)], axis=-1)


if __name__ == "__main__":
    # Case 1: D=32 -> G=4 lane packing, N divisible by G.
    B, L, K, D = 2, 16, 8, 32
    E_idx = jax.random.randint(jax.random.PRNGKey(0), (B, L, K), 0, L).astype(jnp.float32)
    out = jax.block_until_ready(pos_embedding(E_idx, D))
    ref = _reference(E_idx, D)
    assert out.shape == (B, L, K, D), out.shape
    assert jnp.allclose(out, ref, atol=1e-4, rtol=1e-4), float(jnp.max(jnp.abs(out - ref)))

    # Case 2: ragged N (21 not divisible by G=4) — padded, still lane-dense stores.
    E_idx2 = jax.random.randint(jax.random.PRNGKey(1), (1, 7, 3), 0, 7).astype(jnp.float32)
    out2 = jax.block_until_ready(pos_embedding(E_idx2, D))
    ref2 = _reference(E_idx2, D)
    assert out2.shape == (1, 7, 3, D), out2.shape
    assert jnp.allclose(out2, ref2, atol=1e-4, rtol=1e-4), float(jnp.max(jnp.abs(out2 - ref2)))

    # Case 3: D=64 -> G=2 packing.
    E_idx3 = jax.random.randint(jax.random.PRNGKey(2), (2, 8, 4), 0, 8).astype(jnp.float32)
    out3 = jax.block_until_ready(pos_embedding(E_idx3, 64))
    ref3 = _reference(E_idx3, 64)
    assert out3.shape == (2, 8, 4, 64), out3.shape
    assert jnp.allclose(out3, ref3, atol=1e-4, rtol=1e-4), float(jnp.max(jnp.abs(out3 - ref3)))

    print("KERNEL_OK")
</pallas_src>

<mosaic_0001>
module attributes {stable_mosaic.version = 11 : i64} {
  func.func @_pos_emb_kernel(%arg0: i32, %arg1: memref<8x128xf32, #tpu.memory_space<vmem>>, %arg2: memref<8x128xf32, #tpu.memory_space<vmem>>, %arg3: memref<128x128xf32, #tpu.memory_space<vmem>>) attributes {dimension_semantics = [#tpu.dimension_semantics<parallel>], iteration_bounds = array<i64: 1>, scalar_prefetch = 0 : i64, scratch_operands = 0 : i64, tpu.core_type = #tpu.core_type<tc>, window_params = [{transform_indices = @transform_0, window_bounds = array<i64: 8, 128>}, {pipeline_mode = #tpu.pipeline_mode<synchronous>, transform_indices = @transform_1, window_bounds = array<i64: 8, 128>}, {transform_indices = @transform_2, window_bounds = array<i64: 128, 128>}]} {
    %c0 = arith.constant 0 : index
    %c0_0 = arith.constant 0 : index
    %0 = vector.load %arg1[%c0, %c0_0] : memref<8x128xf32, #tpu.memory_space<vmem>>, vector<8x128xf32>
    %c0_1 = arith.constant 0 : index
    %c0_2 = arith.constant 0 : index
    %1 = vector.load %arg2[%c0_1, %c0_2] : memref<8x128xf32, #tpu.memory_space<vmem>>, vector<8x128xf32>
    %cst = arith.constant dense<0.000000e+00> : vector<128x128xf32>
    %2 = tpu.matmul %0, %1, %cst {dimension_numbers = #tpu.dot_dimension_numbers<[0], [0], [1], [1], [0, 1, 1, 1], [], []>, precision = #tpu.contract_precision<fp32>} : vector<8x128xf32>, vector<8x128xf32>, vector<128x128xf32> -> vector<128x128xf32>
    %3 = math.sin %2 : vector<128x128xf32>
    %c0_3 = arith.constant 0 : index
    %c0_4 = arith.constant 0 : index
    %4 = vector.load %arg3[%c0_3, %c0_4] : memref<128x128xf32, #tpu.memory_space<vmem>>, vector<128x128xf32>
    tpu.vector_store %arg3[%c0_3, %c0_4], %3 {strides = array<i32>} : memref<128x128xf32, #tpu.memory_space<vmem>>, vector<128x128xf32>,
    return
  }
  func.func @transform_0(%arg0: i32) -> (i32, i32) {
    %c0_i32 = arith.constant 0 : i32
    %c0_i32_0 = arith.constant 0 : i32
    return %c0_i32, %arg0 : i32, i32
  }
  func.func @transform_1(%arg0: i32) -> (i32, i32) {
    %c0_i32 = arith.constant 0 : i32
    %c0_i32_0 = arith.constant 0 : i32
    %c0_i32_1 = arith.constant 0 : i32
    return %c0_i32, %c0_i32_0 : i32, i32
  }
  func.func @transform_2(%arg0: i32) -> (i32, i32) {
    %c0_i32 = arith.constant 0 : i32
    %c0_i32_0 = arith.constant 0 : i32
    return %arg0, %c0_i32 : i32, i32
  }
}

</mosaic_0001>

<llo_original>
// kernel: tpu_custom_call.1
$region0: #{tpu_custom_call.1}
  #allocation0 [shape = 'u32[]', space=smem, size = 0x4, offset = 0x4, fixed_abs, tag = 'smem constant byte address 0x4 - core index']
  #allocation1 [shape = 'u32[144,128]{1,0:T(1,128)}', space=vmem, size = 0x12000, scoped, tag = 'internal scratch']
  %s0 = inlined_call_operand.hbm [shape: f32[8,128], index: 0, kind: input, shape index: {}]
  %s1 = inlined_call_operand.hbm [shape: f32[8,128], index: 1, kind: input, shape index: {}]
  %s2 = inlined_call_operand.hbm [shape: f32[128,128], index: 2, kind: output, shape index: {}]
  %s3 = sld [smem:[#allocation0]]
  $region26: #{tpu_custom_call.1} parent=0
    _
  %s5 = ssub.s32 1, %s3
  %s6 = scalar_select 0, %s5, %s3
  $region1: #{tpu_custom_call.1} parent=0
    #allocation2 [shape = 'u8[4096]{0}', space=vmem, size = 0x1000, scoped, tag = 'input window, operand 0, single buffered']
    #allocation3 [shape = 's32[1]{0}', space=sflag, size = 0x4, scoped, tag = 'scoped memory for tpu_custom_call.1']
    #allocation4 [shape = 's32[1]{0}', space=sflag, size = 0x4, scoped, tag = 'scoped memory for tpu_custom_call.1']
    #allocation5 [shape = 'u8[4096]{0}', space=vmem, size = 0x1000, scoped, tag = 'input window, operand 1, single buffered']
    #allocation6 [shape = 's32[1]{0}', space=sflag, size = 0x4, scoped, tag = 'scoped memory for tpu_custom_call.1']
    #allocation7 [shape = 'u8[65536]{0}', space=vmem, size = 0x10000, scoped, tag = 'output window, operand 0, single buffered']
    %7 = vsyncpa [#allocation3], 0
    %8 = vsyncpa [#allocation6], 0
    %9 = vsyncpa [#allocation4], 0
    // Predicated region
    $region2: #{tpu_custom_call.1} parent=1 // pred_check
      _
    $region3: #{tpu_custom_call.1} parent=1 // pred_check_branch
      %11 = sbr.rel (0) target = $region5
    $region4: #{tpu_custom_call.1} parent=1 // pred_region
      %s13 = ssub.s32 128, 128
      %14 = vsyncadd [#allocation3], %s13
      %s16 = sshll.u32 [#allocation2], 4
      %s17 = int_to_ptr.vmem [resolvable:$true] %s16
      %19 = dma.hbm_to_vmem [thread:$0]  %s0, 128, %s17, [#allocation3]
    $region5: #{tpu_custom_call.1} parent=1 // pred_fallthru
      _
    // Predicated region
    $region6: #{tpu_custom_call.1} parent=1 // pred_check
      _
    $region7: #{tpu_custom_call.1} parent=1 // pred_check_branch
      %21 = sbr.rel (0) target = $region9
    $region8: #{tpu_custom_call.1} parent=1 // pred_region
      %s23 = ssub.s32 128, 128
      %24 = vsyncadd [#allocation6], %s23
      %s26 = sshll.u32 [#allocation5], 4
      %s27 = int_to_ptr.vmem [resolvable:$true] %s26
      %29 = dma.hbm_to_vmem [thread:$0]  %s1, 128, %s27, [#allocation6]
    $region9: #{tpu_custom_call.1} parent=1 // pred_fallthru
      _
    // Predicated region
    $region10: #{tpu_custom_call.1} parent=1 // pred_check
      _
    $region11: #{tpu_custom_call.1} parent=1 // pred_check_branch
      %31 = sbr.rel (0) target = $region13
    $region12: #{tpu_custom_call.1} parent=1 // pred_region
      %32 = dma.done [#allocation3], 128
    $region13: #{tpu_custom_call.1} parent=1 // pred_fallthru
      _
    // Predicated region
    $region14: #{tpu_custom_call.1} parent=1 // pred_check
      _
    $region15: #{tpu_custom_call.1} parent=1 // pred_check_branch
      %34 = sbr.rel (0) target = $region17
    $region16: #{tpu_custom_call.1} parent=1 // pred_region
      %35 = dma.done [#allocation6], 128
    $region17: #{tpu_custom_call.1} parent=1 // pred_fallthru
      _
    %v36 = vld [vmem:[#allocation2] sm:$0xff]
    %v37 = vld [vmem:[#allocation5] sm:$0xff]
    %38 = vxpose.xlu0.b32.start [1/16] %v36, 128
    %39 = vxpose.xlu0.b32.cont [2/16] 0.0, 128
    %40 = vxpose.xlu0.b32.cont [3/16] 0.0, 128
    %41 = vxpose.xlu0.b32.cont [4/16] 0.0, 128
    %42 = vxpose.xlu0.b32.cont [5/16] 0.0, 128
    %43 = vxpose.xlu0.b32.cont [6/16] 0.0, 128
    %44 = vxpose.xlu0.b32.cont [7/16] 0.0, 128
    %45 = vxpose.xlu0.b32.cont [8/16] 0.0, 128
    %46 = vxpose.xlu0.b32.cont [9/16] 0.0, 128
    %47 = vxpose.xlu0.b32.cont [10/16] 0.0, 128
    %48 = vxpose.xlu0.b32.cont [11/16] 0.0, 128
    %49 = vxpose.xlu0.b32.cont [12/16] 0.0, 128
    %50 = vxpose.xlu0.b32.cont [13/16] 0.0, 128
    %51 = vxpose.xlu0.b32.cont [14/16] 0.0, 128
    %52 = vxpose.xlu0.b32.cont [15/16] 0.0, 128
    %53 = vxpose.xlu0.b32.end [16/16] 0.0, 128
    %v54 = vpop.trf.xlu0
    %v55 = vpop.trf.xlu0
    %v56 = vpop.trf.xlu0
    %v57 = vpop.trf.xlu0
    %v58 = vpop.trf.xlu0
    %v59 = vpop.trf.xlu0
    %v60 = vpop.trf.xlu0
    %v61 = vpop.trf.xlu0
    %v62 = vpop.trf.xlu0
    %v63 = vpop.trf.xlu0
    %v64 = vpop.trf.xlu0
    %v65 = vpop.trf.xlu0
    %v66 = vpop.trf.xlu0
    %v67 = vpop.trf.xlu0
    %v68 = vpop.trf.xlu0
    %v69 = vpop.trf.xlu0
    %vm70 = vcmask 64512
    %v72 = vsel %vm70, %v54, 0
    %v75 = vsel %vm70, %v55, 0
    %v78 = vsel %vm70, %v56, 0
    %v81 = vsel %vm70, %v57, 0
    %v84 = vsel %vm70, %v58, 0
    %v87 = vsel %vm70, %v59, 0
    %v90 = vsel %vm70, %v60, 0
    %v93 = vsel %vm70, %v61, 0
    %v96 = vsel %vm70, %v62, 0
    %v99 = vsel %vm70, %v63, 0
    %v102 = vsel %vm70, %v64, 0
    %v105 = vsel %vm70, %v65, 0
    %v108 = vsel %vm70, %v66, 0
    %v111 = vsel %vm70, %v67, 0
    %v114 = vsel %vm70, %v68, 0
    %v117 = vsel %vm70, %v69, 0
    %119 = vmatprep.subr.mxu0 0.0
    %120 = vmatpush1.msra.mxu0 0.0
    %121 = vmatprep.subr.mxu0 0.0
    %122 = vmatpush1.msra.mxu0 0.0
    %123 = vmatprep.subr.mxu0 0.0
    %124 = vmatpush1.msra.mxu0 0.0
    %125 = vmatprep.subr.mxu0 0.0
    %126 = vmatpush1.msra.mxu0 0.0
    %127 = vmatprep.subr.mxu0 0.0
    %128 = vmatpush1.msra.mxu0 0.0
    %129 = vmatprep.subr.mxu0 0.0
    %130 = vmatpush1.msra.mxu0 0.0
    %131 = vmatprep.subr.mxu0 0.0
    %132 = vmatpush1.msra.mxu0 0.0
    %133 = vmatprep.subr.mxu0 0.0
    %134 = vmatpush1.msra.mxu0 0.0
    %135 = vmatprep.subr.mxu0 0.0
    %136 = vmatpush1.msra.mxu0 0.0
    %137 = vmatprep.subr.mxu0 0.0
    %138 = vmatpush1.msra.mxu0 0.0
    %139 = vmatprep.subr.mxu0 0.0
    %140 = vmatpush1.msra.mxu0 0.0
    %141 = vmatprep.subr.mxu0 0.0
    %142 = vmatpush1.msra.mxu0 0.0
    %143 = vmatprep.subr.mxu0 0.0
    %144 = vmatpush1.msra.mxu0 0.0
    %145 = vmatprep.subr.mxu0 0.0
    %146 = vmatpush1.msra.mxu0 0.0
    %147 = vmatprep.subr.mxu0 0.0
    %148 = vmatpush1.msra.mxu0 0.0
    %149 = vmatprep.subr.mxu0 0.0
    %v150 = vand.u32 %v37, 4294901760
    %151 = vmatpush1.msra.mxu0 %v150
    %152 = vmatprep.subr.mxu0 0.0
    %153 = vmatpush2.msra.mxu0 0.0
    %154 = vmatprep.subr.mxu0 0.0
    %155 = vmatpush2.msra.mxu0 0.0
    %156 = vmatprep.subr.mxu0 0.0
    %157 = vmatpush2.msra.mxu0 0.0
    %158 = vmatprep.subr.mxu0 0.0
    %159 = vmatpush2.msra.mxu0 0.0
    %160 = vmatprep.subr.mxu0 0.0
    %161 = vmatpush2.msra.mxu0 0.0
    %162 = vmatprep.subr.mxu0 0.0
    %163 = vmatpush2.msra.mxu0 0.0
    %164 = vmatprep.subr.mxu0 0.0
    %165 = vmatpush2.msra.mxu0 0.0
    %166 = vmatprep.subr.mxu0 0.0
    %167 = vmatpush2.msra.mxu0 0.0
    %168 = vmatprep.subr.mxu0 0.0
    %169 = vmatpush2.msra.mxu0 0.0
    %170 = vmatprep.subr.mxu0 0.0
    %171 = vmatpush2.msra.mxu0 0.0
    %172 = vmatprep.subr.mxu0 0.0
    %173 = vmatpush2.msra.mxu0 0.0
    %174 = vmatprep.subr.mxu0 0.0
    %175 = vmatpush2.msra.mxu0 0.0
    %176 = vmatprep.subr.mxu0 0.0
    %177 = vmatpush2.msra.mxu0 0.0
    %178 = vmatprep.subr.mxu0 0.0
    %179 = vmatpush2.msra.mxu0 0.0
    %180 = vmatprep.subr.mxu0 0.0
    %181 = vmatpush2.msra.mxu0 0.0
    %182 = vmatprep.subr.mxu0 0.0
    %183 = vmatpush2.msra.mxu0 0.0
    %184 = vmatprep.mubr.f32.mxu0 0.0
    %v185 = vand.u32 %v72, 4294901760
    %v186 = vsub.f32 %v72, %v185
    %v187 = vand.u32 %v186, 4294901760
    %v188 = vsub.f32 %v186, %v187
    %v189 = vand.u32 %v188, 4294901760
    %190 = vmatmul.mubr.f32.gmra.mxu0 %v189
    %v191 = vpop.f32.mrf.mxu0
    %v192 = vadd.f32 0.0, %v191
    %v193 = vpop.f32.mrf.mxu0
    %194 = vmatprep.mubr.f32.mxu0 0.0
    %v195 = vand.u32 %v75, 4294901760
    %v196 = vsub.f32 %v75, %v195
    %v197 = vand.u32 %v196, 4294901760
    %v198 = vsub.f32 %v196, %v197
    %v199 = vand.u32 %v198, 4294901760
    %200 = vmatmul.mubr.f32.gmra.mxu0 %v199
    %v201 = vpop.f32.mrf.mxu0
    %v202 = vadd.f32 0.0, %v201
    %v203 = vpop.f32.mrf.mxu0
    %204 = vmatprep.mubr.f32.mxu0 0.0
    %v205 = vand.u32 %v78, 4294901760
    %v206 = vsub.f32 %v78, %v205
    %v207 = vand.u32 %v206, 4294901760
    %v208 = vsub.f32 %v206, %v207
    %v209 = vand.u32 %v208, 4294901760
    %210 = vmatmul.mubr.f32.gmra.mxu0 %v209
    %v211 = vpop.f32.mrf.mxu0
    %v212 = vadd.f32 0.0, %v211
    %v213 = vpop.f32.mrf.mxu0
    %214 = vmatprep.mubr.f32.mxu0 0.0
    %v215 = vand.u32 %v81, 4294901760
    %v216 = vsub.f32 %v81, %v215
    %v217 = vand.u32 %v216, 4294901760
    %v218 = vsub.f32 %v216, %v217
    %v219 = vand.u32 %v218, 4294901760
    %220 = vmatmul.mubr.f32.gmra.mxu0 %v219
    %v221 = vpop.f32.mrf.mxu0
    %v222 = vadd.f32 0.0, %v221
    %v223 = vpop.f32.mrf.mxu0
    %224 = vmatprep.mubr.f32.mxu0 0.0
    %v225 = vand.u32 %v84, 4294901760
    %v226 = vsub.f32 %v84, %v225
    %v227 = vand.u32 %v226, 4294901760
    %v228 = vsub.f32 %v226, %v227
    %v229 = vand.u32 %v228, 4294901760
    %230 = vmatmul.mubr.f32.gmra.mxu0 %v229
    %v231 = vpop.f32.mrf.mxu0
    %v232 = vadd.f32 0.0, %v231
    %v233 = vpop.f32.mrf.mxu0
    %234 = vmatprep.mubr.f32.mxu0 0.0
    %v235 = vand.u32 %v87, 4294901760
    %v236 = vsub.f32 %v87, %v235
    %v237 = vand.u32 %v236, 4294901760
    %v238 = vsub.f32 %v236, %v237
    %v239 = vand.u32 %v238, 4294901760
    %240 = vmatmul.mubr.f32.gmra.mxu0 %v239
    %v241 = vpop.f32.mrf.mxu0
    %v242 = vadd.f32 0.0, %v241
    %v243 = vpop.f32.mrf.mxu0
    %244 = vmatprep.mubr.f32.mxu0 0.0
    %v245 = vand.u32 %v90, 4294901760
    %v246 = vsub.f32 %v90, %v245
    %v247 = vand.u32 %v246, 4294901760
    %v248 = vsub.f32 %v246, %v247
    %v249 = vand.u32 %v248, 4294901760
    %250 = vmatmul.mubr.f32.gmra.mxu0 %v249
    %v251 = vpop.f32.mrf.mxu0
    %v252 = vadd.f32 0.0, %v251
    %v253 = vpop.f32.mrf.mxu0
    %254 = vmatprep.mubr.f32.mxu0 0.0
    %v255 = vand.u32 %v93, 4294901760
    %v256 = vsub.f32 %v93, %v255
    %v257 = vand.u32 %v256, 4294901760
    %v258 = vsub.f32 %v256, %v257
    %v259 = vand.u32 %v258, 4294901760
    %260 = vmatmul.mubr.f32.gmra.mxu0 %v259
    %v261 = vpop.f32.mrf.mxu0
    %v262 = vadd.f32 0.0, %v261
    %v263 = vpop.f32.mrf.mxu0
    %264 = vmatprep.mubr.f32.mxu0 0.0
    %v265 = vand.u32 %v96, 4294901760
    %v266 = vsub.f32 %v96, %v265
    %v267 = vand.u32 %v266, 4294901760
    %v268 = vsub.f32 %v266, %v267
    %v269 = vand.u32 %v268, 4294901760
    %270 = vmatmul.mubr.f32.gmra.mxu0 %v269
    %v271 = vpop.f32.mrf.mxu0
    %v272 = vadd.f32 0.0, %v271
    %v273 = vpop.f32.mrf.mxu0
    %274 = vmatprep.mubr.f32.mxu0 0.0
    %v275 = vand.u32 %v99, 4294901760
    %v276 = vsub.f32 %v99, %v275
    %v277 = vand.u32 %v276, 4294901760
    %v278 = vsub.f32 %v276, %v277
    %v279 = vand.u32 %v278, 4294901760
    %280 = vmatmul.mubr.f32.gmra.mxu0 %v279
    %v281 = vpop.f32.mrf.mxu0
    %v282 = vadd.f32 0.0, %v281
    %v283 = vpop.f32.mrf.mxu0
    %284 = vmatprep.mubr.f32.mxu0 0.0
    %v285 = vand.u32 %v102, 4294901760
    %v286 = vsub.f32 %v102, %v285
    %v287 = vand.u32 %v286, 4294901760
    %v288 = vsub.f32 %v286, %v287
    %v289 = vand.u32 %v288, 4294901760
    %290 = vmatmul.mubr.f32.gmra.mxu0 %v289
    %v291 = vpop.f32.mrf.mxu0
    %v292 = vadd.f32 0.0, %v291
    %v293 = vpop.f32.mrf.mxu0
    %294 = vmatprep.mubr.f32.mxu0 0.0
    %v295 = vand.u32 %v105, 4294901760
    %v296 = vsub.f32 %v105, %v295
    %v297 = vand.u32 %v296, 4294901760
    %v298 = vsub.f32 %v296, %v297
    %v299 = vand.u32 %v298, 4294901760
    %300 = vmatmul.mubr.f32.gmra.mxu0 %v299
    %v301 = vpop.f32.mrf.mxu0
    %v302 = vadd.f32 0.0, %v301
    %v303 = vpop.f32.mrf.mxu0
    %304 = vmatprep.mubr.f32.mxu0 0.0
    %v305 = vand.u32 %v108, 4294901760
    %v306 = vsub.f32 %v108, %v305
    %v307 = vand.u32 %v306, 4294901760
    %v308 = vsub.f32 %v306, %v307
    %v309 = vand.u32 %v308, 4294901760
    %310 = vmatmul.mubr.f32.gmra.mxu0 %v309
    %v311 = vpop.f32.mrf.mxu0
    %v312 = vadd.f32 0.0, %v311
    %v313 = vpop.f32.mrf.mxu0
    %314 = vmatprep.mubr.f32.mxu0 0.0
    %v315 = vand.u32 %v111, 4294901760
    %v316 = vsub.f32 %v111, %v315
    %v317 = vand.u32 %v316, 4294901760
    %v318 = vsub.f32 %v316, %v317
    %v319 = vand.u32 %v318, 4294901760
    %320 = vmatmul.mubr.f32.gmra.mxu0 %v319
    %v321 = vpop.f32.mrf.mxu0
    %v322 = vadd.f32 0.0, %v321
    %v323 = vpop.f32.mrf.mxu0
    %324 = vmatprep.mubr.f32.mxu0 0.0
    %v325 = vand.u32 %v114, 4294901760
    %v326 = vsub.f32 %v114, %v325
    %v327 = vand.u32 %v326, 4294901760
    %v328 = vsub.f32 %v326, %v327
    %v329 = vand.u32 %v328, 4294901760
    %330 = vmatmul.mubr.f32.gmra.mxu0 %v329
    %v331 = vpop.f32.mrf.mxu0
    %v332 = vadd.f32 0.0, %v331
    %v333 = vpop.f32.mrf.mxu0
    %334 = vmatprep.mubr.f32.mxu0 0.0
    %v335 = vand.u32 %v117, 4294901760
    %v336 = vsub.f32 %v117, %v335
    %v337 = vand.u32 %v336, 4294901760
    %v338 = vsub.f32 %v336, %v337
    %v339 = vand.u32 %v338, 4294901760
    %340 = vmatmul.mubr.f32.gmra.mxu0 %v339
    %v341 = vpop.f32.mrf.mxu0
    %v342 = vadd.f32 0.0, %v341
    %v343 = vpop.f32.mrf.mxu0
    %344 = vdwg.mxu0
    %345 = vmatprep.subr.mxu0 0.0
    %346 = vmatpush1.msra.mxu0 0.0
    %347 = vmatprep.subr.mxu0 0.0
    %348 = vmatpush1.msra.mxu0 0.0
    %349 = vmatprep.subr.mxu0 0.0
    %350 = vmatpush1.msra.mxu0 0.0
    %351 = vmatprep.subr.mxu0 0.0
    %352 = vmatpush1.msra.mxu0 0.0
    %353 = vmatprep.subr.mxu0 0.0
    %354 = vmatpush1.msra.mxu0 0.0
    %355 = vmatprep.subr.mxu0 0.0
    %356 = vmatpush1.msra.mxu0 0.0
    %357 = vmatprep.subr.mxu0 0.0
    %358 = vmatpush1.msra.mxu0 0.0
    %359 = vmatprep.subr.mxu0 0.0
    %360 = vmatpush1.msra.mxu0 0.0
    %361 = vmatprep.subr.mxu0 0.0
    %362 = vmatpush1.msra.mxu0 0.0
    %363 = vmatprep.subr.mxu0 0.0
    %364 = vmatpush1.msra.mxu0 0.0
    %365 = vmatprep.subr.mxu0 0.0
    %366 = vmatpush1.msra.mxu0 0.0
    %367 = vmatprep.subr.mxu0 0.0
    %368 = vmatpush1.msra.mxu0 0.0
    %369 = vmatprep.subr.mxu0 0.0
    %370 = vmatpush1.msra.mxu0 0.0
    %371 = vmatprep.subr.mxu0 0.0
    %372 = vmatpush1.msra.mxu0 0.0
    %373 = vmatprep.subr.mxu0 0.0
    %374 = vmatpush1.msra.mxu0 0.0
    %375 = vmatprep.subr.mxu0 0.0
    %v376 = vand.u32 %v37, 4294901760
    %v377 = vsub.f32 %v37, %v376
    %v378 = vand.u32 %v377, 4294901760
    %v379 = vsub.f32 %v377, %v378
    %v380 = vand.u32 %v379, 4294901760
    %381 = vmatpush1.msra.mxu0 %v380
    %382 = vmatprep.subr.mxu0 0.0
    %383 = vmatpush2.msra.mxu0 0.0
    %384 = vmatprep.subr.mxu0 0.0
    %385 = vmatpush2.msra.mxu0 0.0
    %386 = vmatprep.subr.mxu0 0.0
    %387 = vmatpush2.msra.mxu0 0.0
    %388 = vmatprep.subr.mxu0 0.0
    %389 = vmatpush2.msra.mxu0 0.0
    %390 = vmatprep.subr.mxu0 0.0
    %391 = vmatpush2.msra.mxu0 0.0
    %392 = vmatprep.subr.mxu0 0.0
    %393 = vmatpush2.msra.mxu0 0.0
    %394 = vmatprep.subr.mxu0 0.0
    %395 = vmatpush2.msra.mxu0 0.0
    %396 = vmatprep.subr.mxu0 0.0
    %397 = vmatpush2.msra.mxu0 0.0
    %398 = vmatprep.subr.mxu0 0.0
    %399 = vmatpush2.msra.mxu0 0.0
    %400 = vmatprep.subr.mxu0 0.0
    %401 = vmatpush2.msra.mxu0 0.0
    %402 = vmatprep.subr.mxu0 0.0
    %403 = vmatpush2.msra.mxu0 0.0
    %404 = vmatprep.subr.mxu0 0.0
    %405 = vmatpush2.msra.mxu0 0.0
    %406 = vmatprep.subr.mxu0 0.0
    %407 = vmatpush2.msra.mxu0 0.0
    %408 = vmatprep.subr.mxu0 0.0
    %409 = vmatpush2.msra.mxu0 0.0
    %410 = vmatprep.subr.mxu0 0.0
    %411 = vmatpush2.msra.mxu0 0.0
    %412 = vmatprep.subr.mxu0 0.0
    %413 = vmatpush2.msra.mxu0 0.0
    %414 = vmatprep.mubr.f32.mxu0 0.0
    %v415 = vand.u32 %v72, 4294901760
    %416 = vmatmul.mubr.f32.gmra.mxu0 %v415
    %v417 = vpop.f32.mrf.mxu0
    %v418 = vadd.f32 %v192, %v417
    %v419 = vpop.f32.mrf.mxu0
    %420 = vmatprep.mubr.f32.mxu0 0.0
    %v421 = vand.u32 %v75, 4294901760
    %422 = vmatmul.mubr.f32.gmra.mxu0 %v421
    %v423 = vpop.f32.mrf.mxu0
    %v424 = vadd.f32 %v202, %v423
    %v425 = vpop.f32.mrf.mxu0
    %426 = vmatprep.mubr.f32.mxu0 0.0
    %v427 = vand.u32 %v78, 4294901760
    %428 = vmatmul.mubr.f32.gmra.mxu0 %v427
    %v429 = vpop.f32.mrf.mxu0
    %v430 = vadd.f32 %v212, %v429
    %v431 = vpop.f32.mrf.mxu0
    %432 = vmatprep.mubr.f32.mxu0 0.0
    %v433 = vand.u32 %v81, 4294901760
    %434 = vmatmul.mubr.f32.gmra.mxu0 %v433
    %v435 = vpop.f32.mrf.mxu0
    %v436 = vadd.f32 %v222, %v435
    %v437 = vpop.f32.mrf.mxu0
    %438 = vmatprep.mubr.f32.mxu0 0.0
    %v439 = vand.u32 %v84, 4294901760
    %440 = vmatmul.mubr.f32.gmra.mxu0 %v439
    %v441 = vpop.f32.mrf.mxu0
    %v442 = vadd.f32 %v232, %v441
    %v443 = vpop.f32.mrf.mxu0
    %444 = vmatprep.mubr.f32.mxu0 0.0
    %v445 = vand.u32 %v87, 4294901760
    %446 = vmatmul.mubr.f32.gmra.mxu0 %v445
    %v447 = vpop.f32.mrf.mxu0
    %v448 = vadd.f32 %v242, %v447
    %v449 = vpop.f32.mrf.mxu0
    %450 = vmatprep.mubr.f32.mxu0 0.0
    %v451 = vand.u32 %v90, 4294901760
    %452 = vmatmul.mubr.f32.gmra.mxu0 %v451
    %v453 = vpop.f32.mrf.mxu0
    %v454 = vadd.f32 %v252, %v453
    %v455 = vpop.f32.mrf.mxu0
    %456 = vmatprep.mubr.f32.mxu0 0.0
    %v457 = vand.u32 %v93, 4294901760
    %458 = vmatmul.mubr.f32.gmra.mxu0 %v457
    %v459 = vpop.f32.mrf.mxu0
    %v460 = vadd.f32 %v262, %v459
    %v461 = vpop.f32.mrf.mxu0
    %462 = vmatprep.mubr.f32.mxu0 0.0
    %v463 = vand.u32 %v96, 4294901760
    %464 = vmatmul.mubr.f32.gmra.mxu0 %v463
    %v465 = vpop.f32.mrf.mxu0
    %v466 = vadd.f32 %v272, %v465
    %v467 = vpop.f32.mrf.mxu0
    %468 = vmatprep.mubr.f32.mxu0 0.0
    %v469 = vand.u32 %v99, 4294901760
    %470 = vmatmul.mubr.f32.gmra.mxu0 %v469
    %v471 = vpop.f32.mrf.mxu0
    %v472 = vadd.f32 %v282, %v471
    %v473 = vpop.f32.mrf.mxu0
    %474 = vmatprep.mubr.f32.mxu0 0.0
    %v475 = vand.u32 %v102, 4294901760
    %476 = vmatmul.mubr.f32.gmra.mxu0 %v475
    %v477 = vpop.f32.mrf.mxu0
    %v478 = vadd.f32 %v292, %v477
    %v479 = vpop.f32.mrf.mxu0
    %480 = vmatprep.mubr.f32.mxu0 0.0
    %v481 = vand.u32 %v105, 4294901760
    %482 = vmatmul.mubr.f32.gmra.mxu0 %v481
    %v483 = vpop.f32.mrf.mxu0
    %v484 = vadd.f32 %v302, %v483
    %v485 = vpop.f32.mrf.mxu0
    %486 = vmatprep.mubr.f32.mxu0 0.0
    %v487 = vand.u32 %v108, 4294901760
    %488 = vmatmul.mubr.f32.gmra.mxu0 %v487
    %v489 = vpop.f32.mrf.mxu0
    %v490 = vadd.f32 %v312, %v489
    %v491 = vpop.f32.mrf.mxu0
    %492 = vmatprep.mubr.f32.mxu0 0.0
    %v493 = vand.u32 %v111, 4294901760
    %494 = vmatmul.mubr.f32.gmra.mxu0 %v493
    %v495 = vpop.f32.mrf.mxu0
    %v496 = vadd.f32 %v322, %v495
    %v497 = vpop.f32.mrf.mxu0
    %498 = vmatprep.mubr.f32.mxu0 0.0
    %v499 = vand.u32 %v114, 4294901760
    %500 = vmatmul.mubr.f32.gmra.mxu0 %v499
    %v501 = vpop.f32.mrf.mxu0
    %v502 = vadd.f32 %v332, %v501
    %v503 = vpop.f32.mrf.mxu0
    %504 = vmatprep.mubr.f32.mxu0 0.0
    %v505 = vand.u32 %v117, 4294901760
    %506 = vmatmul.mubr.f32.gmra.mxu0 %v505
    %v507 = vpop.f32.mrf.mxu0
    %v508 = vadd.f32 %v342, %v507
    %v509 = vpop.f32.mrf.mxu0
    %510 = vdwg.mxu0
    %511 = vmatprep.subr.mxu0 0.0
    %512 = vmatpush1.msra.mxu0 0.0
    %513 = vmatprep.subr.mxu0 0.0
    %514 = vmatpush1.msra.mxu0 0.0
    %515 = vmatprep.subr.mxu0 0.0
    %516 = vmatpush1.msra.mxu0 0.0
    %517 = vmatprep.subr.mxu0 0.0
    %518 = vmatpush1.msra.mxu0 0.0
    %519 = vmatprep.subr.mxu0 0.0
    %520 = vmatpush1.msra.mxu0 0.0
    %521 = vmatprep.subr.mxu0 0.0
    %522 = vmatpush1.msra.mxu0 0.0
    %523 = vmatprep.subr.mxu0 0.0
    %524 = vmatpush1.msra.mxu0 0.0
    %525 = vmatprep.subr.mxu0 0.0
    %526 = vmatpush1.msra.mxu0 0.0
    %527 = vmatprep.subr.mxu0 0.0
    %528 = vmatpush1.msra.mxu0 0.0
    %529 = vmatprep.subr.mxu0 0.0
    %530 = vmatpush1.msra.mxu0 0.0
    %531 = vmatprep.subr.mxu0 0.0
    %532 = vmatpush1.msra.mxu0 0.0
    %533 = vmatprep.subr.mxu0 0.0
    %534 = vmatpush1.msra.mxu0 0.0
    %535 = vmatprep.subr.mxu0 0.0
    %536 = vmatpush1.msra.mxu0 0.0
    %537 = vmatprep.subr.mxu0 0.0
    %538 = vmatpush1.msra.mxu0 0.0
    %539 = vmatprep.subr.mxu0 0.0
    %540 = vmatpush1.msra.mxu0 0.0
    %541 = vmatprep.subr.mxu0 0.0
    %v542 = vand.u32 %v37, 4294901760
    %v543 = vsub.f32 %v37, %v542
    %544 = vmatpush1.msra.mxu0 %v543
    %545 = vmatprep.subr.mxu0 0.0
    %546 = vmatpush2.msra.mxu0 0.0
    %547 = vmatprep.subr.mxu0 0.0
    %548 = vmatpush2.msra.mxu0 0.0
    %549 = vmatprep.subr.mxu0 0.0
    %550 = vmatpush2.msra.mxu0 0.0
    %551 = vmatprep.subr.mxu0 0.0
    %552 = vmatpush2.msra.mxu0 0.0
    %553 = vmatprep.subr.mxu0 0.0
    %554 = vmatpush2.msra.mxu0 0.0
    %555 = vmatprep.subr.mxu0 0.0
    %556 = vmatpush2.msra.mxu0 0.0
    %557 = vmatprep.subr.mxu0 0.0
    %558 = vmatpush2.msra.mxu0 0.0
    %559 = vmatprep.subr.mxu0 0.0
    %560 = vmatpush2.msra.mxu0 0.0
    %561 = vmatprep.subr.mxu0 0.0
    %562 = vmatpush2.msra.mxu0 0.0
    %563 = vmatprep.subr.mxu0 0.0
    %564 = vmatpush2.msra.mxu0 0.0
    %565 = vmatprep.subr.mxu0 0.0
    %566 = vmatpush2.msra.mxu0 0.0
    %567 = vmatprep.subr.mxu0 0.0
    %568 = vmatpush2.msra.mxu0 0.0
    %569 = vmatprep.subr.mxu0 0.0
    %570 = vmatpush2.msra.mxu0 0.0
    %571 = vmatprep.subr.mxu0 0.0
    %572 = vmatpush2.msra.mxu0 0.0
    %573 = vmatprep.subr.mxu0 0.0
    %574 = vmatpush2.msra.mxu0 0.0
    %575 = vmatprep.subr.mxu0 0.0
    %576 = vmatpush2.msra.mxu0 0.0
    %577 = vmatprep.mubr.f32.mxu0 0.0
    %v578 = vand.u32 %v72, 4294901760
    %v579 = vsub.f32 %v72, %v578
    %580 = vmatmul.mubr.f32.gmra.mxu0 %v579
    %v581 = vpop.f32.mrf.mxu0
    %v582 = vadd.f32 %v418, %v581
    %v583 = vpop.f32.mrf.mxu0
    %584 = vmatprep.mubr.f32.mxu0 0.0
    %v585 = vand.u32 %v75, 4294901760
    %v586 = vsub.f32 %v75, %v585
    %587 = vmatmul.mubr.f32.gmra.mxu0 %v586
    %v588 = vpop.f32.mrf.mxu0
    %v589 = vadd.f32 %v424, %v588
    %v590 = vpop.f32.mrf.mxu0
    %591 = vmatprep.mubr.f32.mxu0 0.0
    %v592 = vand.u32 %v78, 4294901760
    %v593 = vsub.f32 %v78, %v592
    %594 = vmatmul.mubr.f32.gmra.mxu0 %v593
    %v595 = vpop.f32.mrf.mxu0
    %v596 = vadd.f32 %v430, %v595
    %v597 = vpop.f32.mrf.mxu0
    %598 = vmatprep.mubr.f32.mxu0 0.0
    %v599 = vand.u32 %v81, 4294901760
    %v600 = vsub.f32 %v81, %v599
    %601 = vmatmul.mubr.f32.gmra.mxu0 %v600
    %v602 = vpop.f32.mrf.mxu0
    %v603 = vadd.f32 %v436, %v602
    %v604 = vpop.f32.mrf.mxu0
    %605 = vmatprep.mubr.f32.mxu0 0.0
    %v606 = vand.u32 %v84, 4294901760
    %v607 = vsub.f32 %v84, %v606
    %608 = vmatmul.mubr.f32.gmra.mxu0 %v607
    %v609 = vpop.f32.mrf.mxu0
    %v610 = vadd.f32 %v442, %v609
    %v611 = vpop.f32.mrf.mxu0
    %612 = vmatprep.mubr.f32.mxu0 0.0
    %v613 = vand.u32 %v87, 4294901760
    %v614 = vsub.f32 %v87, %v613
    %615 = vmatmul.mubr.f32.gmra.mxu0 %v614
    %v616 = vpop.f32.mrf.mxu0
    %v617 = vadd.f32 %v448, %v616
    %v618 = vpop.f32.mrf.mxu0
    %619 = vmatprep.mubr.f32.mxu0 0.0
    %v620 = vand.u32 %v90, 4294901760
    %v621 = vsub.f32 %v90, %v620
    %622 = vmatmul.mubr.f32.gmra.mxu0 %v621
    %v623 = vpop.f32.mrf.mxu0
    %v624 = vadd.f32 %v454, %v623
    %v625 = vpop.f32.mrf.mxu0
    %626 = vmatprep.mubr.f32.mxu0 0.0
    %v627 = vand.u32 %v93, 4294901760
    %v628 = vsub.f32 %v93, %v627
    %629 = vmatmul.mubr.f32.gmra.mxu0 %v628
    %v630 = vpop.f32.mrf.mxu0
    %v631 = vadd.f32 %v460, %v630
    %v632 = vpop.f32.mrf.mxu0
    %633 = vmatprep.mubr.f32.mxu0 0.0
    %v634 = vand.u32 %v96, 4294901760
    %v635 = vsub.f32 %v96, %v634
    %636 = vmatmul.mubr.f32.gmra.mxu0 %v635
    %v637 = vpop.f32.mrf.mxu0
    %v638 = vadd.f32 %v466, %v637
    %v639 = vpop.f32.mrf.mxu0
    %640 = vmatprep.mubr.f32.mxu0 0.0
    %v641 = vand.u32 %v99, 4294901760
    %v642 = vsub.f32 %v99, %v641
    %643 = vmatmul.mubr.f32.gmra.mxu0 %v642
    %v644 = vpop.f32.mrf.mxu0
    %v645 = vadd.f32 %v472, %v644
    %v646 = vpop.f32.mrf.mxu0
    %647 = vmatprep.mubr.f32.mxu0 0.0
    %v648 = vand.u32 %v102, 4294901760
    %v649 = vsub.f32 %v102, %v648
    %650 = vmatmul.mubr.f32.gmra.mxu0 %v649
    %v651 = vpop.f32.mrf.mxu0
    %v652 = vadd.f32 %v478, %v651
    %v653 = vpop.f32.mrf.mxu0
    %654 = vmatprep.mubr.f32.mxu0 0.0
    %v655 = vand.u32 %v105, 4294901760
    %v656 = vsub.f32 %v105, %v655
    %657 = vmatmul.mubr.f32.gmra.mxu0 %v656
    %v658 = vpop.f32.mrf.mxu0
    %v659 = vadd.f32 %v484, %v658
    %v660 = vpop.f32.mrf.mxu0
    %661 = vmatprep.mubr.f32.mxu0 0.0
    %v662 = vand.u32 %v108, 4294901760
    %v663 = vsub.f32 %v108, %v662
    %664 = vmatmul.mubr.f32.gmra.mxu0 %v663
    %v665 = vpop.f32.mrf.mxu0
    %v666 = vadd.f32 %v490, %v665
    %v667 = vpop.f32.mrf.mxu0
    %668 = vmatprep.mubr.f32.mxu0 0.0
    %v669 = vand.u32 %v111, 4294901760
    %v670 = vsub.f32 %v111, %v669
    %671 = vmatmul.mubr.f32.gmra.mxu0 %v670
    %v672 = vpop.f32.mrf.mxu0
    %v673 = vadd.f32 %v496, %v672
    %v674 = vpop.f32.mrf.mxu0
    %675 = vmatprep.mubr.f32.mxu0 0.0
    %v676 = vand.u32 %v114, 4294901760
    %v677 = vsub.f32 %v114, %v676
    %678 = vmatmul.mubr.f32.gmra.mxu0 %v677
    %v679 = vpop.f32.mrf.mxu0
    %v680 = vadd.f32 %v502, %v679
    %v681 = vpop.f32.mrf.mxu0
    %682 = vmatprep.mubr.f32.mxu0 0.0
    %v683 = vand.u32 %v117, 4294901760
    %v684 = vsub.f32 %v117, %v683
    %685 = vmatmul.mubr.f32.gmra.mxu0 %v684
    %v686 = vpop.f32.mrf.mxu0
    %v687 = vadd.f32 %v508, %v686
    %v688 = vpop.f32.mrf.mxu0
    %689 = vdwg.mxu0
    %690 = vmatprep.subr.mxu0 0.0
    %691 = vmatpush1.msra.mxu0 0.0
    %692 = vmatprep.subr.mxu0 0.0
    %693 = vmatpush1.msra.mxu0 0.0
    %694 = vmatprep.subr.mxu0 0.0
    %695 = vmatpush1.msra.mxu0 0.0
    %696 = vmatprep.subr.mxu0 0.0
    %697 = vmatpush1.msra.mxu0 0.0
    %698 = vmatprep.subr.mxu0 0.0
    %699 = vmatpush1.msra.mxu0 0.0
    %700 = vmatprep.subr.mxu0 0.0
    %701 = vmatpush1.msra.mxu0 0.0
    %702 = vmatprep.subr.mxu0 0.0
    %703 = vmatpush1.msra.mxu0 0.0
    %704 = vmatprep.subr.mxu0 0.0
    %705 = vmatpush1.msra.mxu0 0.0
    %706 = vmatprep.subr.mxu0 0.0
    %707 = vmatpush1.msra.mxu0 0.0
    %708 = vmatprep.subr.mxu0 0.0
    %709 = vmatpush1.msra.mxu0 0.0
    %710 = vmatprep.subr.mxu0 0.0
    %711 = vmatpush1.msra.mxu0 0.0
    %712 = vmatprep.subr.mxu0 0.0
    %713 = vmatpush1.msra.mxu0 0.0
    %714 = vmatprep.subr.mxu0 0.0
    %715 = vmatpush1.msra.mxu0 0.0
    %716 = vmatprep.subr.mxu0 0.0
    %717 = vmatpush1.msra.mxu0 0.0
    %718 = vmatprep.subr.mxu0 0.0
    %719 = vmatpush1.msra.mxu0 0.0
    %720 = vmatprep.subr.mxu0 0.0
    %v721 = vand.u32 %v37, 4294901760
    %722 = vmatpush1.msra.mxu0 %v721
    %723 = vmatprep.subr.mxu0 0.0
    %724 = vmatpush2.msra.mxu0 0.0
    %725 = vmatprep.subr.mxu0 0.0
    %726 = vmatpush2.msra.mxu0 0.0
    %727 = vmatprep.subr.mxu0 0.0
    %728 = vmatpush2.msra.mxu0 0.0
    %729 = vmatprep.subr.mxu0 0.0
    %730 = vmatpush2.msra.mxu0 0.0
    %731 = vmatprep.subr.mxu0 0.0
    %732 = vmatpush2.msra.mxu0 0.0
    %733 = vmatprep.subr.mxu0 0.0
    %734 = vmatpush2.msra.mxu0 0.0
    %735 = vmatprep.subr.mxu0 0.0
    %736 = vmatpush2.msra.mxu0 0.0
    %737 = vmatprep.subr.mxu0 0.0
    %738 = vmatpush2.msra.mxu0 0.0
    %739 = vmatprep.subr.mxu0 0.0
    %740 = vmatpush2.msra.mxu0 0.0
    %741 = vmatprep.subr.mxu0 0.0
    %742 = vmatpush2.msra.mxu0 0.0
    %743 = vmatprep.subr.mxu0 0.0
    %744 = vmatpush2.msra.mxu0 0.0
    %745 = vmatprep.subr.mxu0 0.0
    %746 = vmatpush2.msra.mxu0 0.0
    %747 = vmatprep.subr.mxu0 0.0
    %748 = vmatpush2.msra.mxu0 0.0
    %749 = vmatprep.subr.mxu0 0.0
    %750 = vmatpush2.msra.mxu0 0.0
    %751 = vmatprep.subr.mxu0 0.0
    %752 = vmatpush2.msra.mxu0 0.0
    %753 = vmatprep.subr.mxu0 0.0
    %754 = vmatpush2.msra.mxu0 0.0
    %755 = vmatprep.mubr.f32.mxu0 0.0
    %v756 = vand.u32 %v72, 4294901760
    %v757 = vsub.f32 %v72, %v756
    %v758 = vand.u32 %v757, 4294901760
    %759 = vmatmul.mubr.f32.gmra.mxu0 %v758
    %v760 = vpop.f32.mrf.mxu0
    %v761 = vadd.f32 %v582, %v760
    %v762 = vpop.f32.mrf.mxu0
    %763 = vmatprep.mubr.f32.mxu0 0.0
    %v764 = vand.u32 %v75, 4294901760
    %v765 = vsub.f32 %v75, %v764
    %v766 = vand.u32 %v765, 4294901760
    %767 = vmatmul.mubr.f32.gmra.mxu0 %v766
    %v768 = vpop.f32.mrf.mxu0
    %v769 = vadd.f32 %v589, %v768
    %v770 = vpop.f32.mrf.mxu0
    %771 = vmatprep.mubr.f32.mxu0 0.0
    %v772 = vand.u32 %v78, 4294901760
    %v773 = vsub.f32 %v78, %v772
    %v774 = vand.u32 %v773, 4294901760
    %775 = vmatmul.mubr.f32.gmra.mxu0 %v774
    %v776 = vpop.f32.mrf.mxu0
    %v777 = vadd.f32 %v596, %v776
    %v778 = vpop.f32.mrf.mxu0
    %779 = vmatprep.mubr.f32.mxu0 0.0
    %v780 = vand.u32 %v81, 4294901760
    %v781 = vsub.f32 %v81, %v780
    %v782 = vand.u32 %v781, 4294901760
    %783 = vmatmul.mubr.f32.gmra.mxu0 %v782
    %v784 = vpop.f32.mrf.mxu0
    %v785 = vadd.f32 %v603, %v784
    %v786 = vpop.f32.mrf.mxu0
    %787 = vmatprep.mubr.f32.mxu0 0.0
    %v788 = vand.u32 %v84, 4294901760
    %v789 = vsub.f32 %v84, %v788
    %v790 = vand.u32 %v789, 4294901760
    %791 = vmatmul.mubr.f32.gmra.mxu0 %v790
    %v792 = vpop.f32.mrf.mxu0
    %v793 = vadd.f32 %v610, %v792
    %v794 = vpop.f32.mrf.mxu0
    %795 = vmatprep.mubr.f32.mxu0 0.0
    %v796 = vand.u32 %v87, 4294901760
    %v797 = vsub.f32 %v87, %v796
    %v798 = vand.u32 %v797, 4294901760
    %799 = vmatmul.mubr.f32.gmra.mxu0 %v798
    %v800 = vpop.f32.mrf.mxu0
    %v801 = vadd.f32 %v617, %v800
    %v802 = vpop.f32.mrf.mxu0
    %803 = vmatprep.mubr.f32.mxu0 0.0
    %v804 = vand.u32 %v90, 4294901760
    %v805 = vsub.f32 %v90, %v804
    %v806 = vand.u32 %v805, 4294901760
    %807 = vmatmul.mubr.f32.gmra.mxu0 %v806
    %v808 = vpop.f32.mrf.mxu0
    %v809 = vadd.f32 %v624, %v808
    %v810 = vpop.f32.mrf.mxu0
    %811 = vmatprep.mubr.f32.mxu0 0.0
    %v812 = vand.u32 %v93, 4294901760
    %v813 = vsub.f32 %v93, %v812
    %v814 = vand.u32 %v813, 4294901760
    %815 = vmatmul.mubr.f32.gmra.mxu0 %v814
    %v816 = vpop.f32.mrf.mxu0
    %v817 = vadd.f32 %v631, %v816
    %v818 = vpop.f32.mrf.mxu0
    %819 = vmatprep.mubr.f32.mxu0 0.0
    %v820 = vand.u32 %v96, 4294901760
    %v821 = vsub.f32 %v96, %v820
    %v822 = vand.u32 %v821, 4294901760
    %823 = vmatmul.mubr.f32.gmra.mxu0 %v822
    %v824 = vpop.f32.mrf.mxu0
    %v825 = vadd.f32 %v638, %v824
    %v826 = vpop.f32.mrf.mxu0
    %827 = vmatprep.mubr.f32.mxu0 0.0
    %v828 = vand.u32 %v99, 4294901760
    %v829 = vsub.f32 %v99, %v828
    %v830 = vand.u32 %v829, 4294901760
    %831 = vmatmul.mubr.f32.gmra.mxu0 %v830
    %v832 = vpop.f32.mrf.mxu0
    %v833 = vadd.f32 %v645, %v832
    %v834 = vpop.f32.mrf.mxu0
    %835 = vmatprep.mubr.f32.mxu0 0.0
    %v836 = vand.u32 %v102, 4294901760
    %v837 = vsub.f32 %v102, %v836
    %v838 = vand.u32 %v837, 4294901760
    %839 = vmatmul.mubr.f32.gmra.mxu0 %v838
    %v840 = vpop.f32.mrf.mxu0
    %v841 = vadd.f32 %v652, %v840
    %v842 = vpop.f32.mrf.mxu0
    %843 = vmatprep.mubr.f32.mxu0 0.0
    %v844 = vand.u32 %v105, 4294901760
    %v845 = vsub.f32 %v105, %v844
    %v846 = vand.u32 %v845, 4294901760
    %847 = vmatmul.mubr.f32.gmra.mxu0 %v846
    %v848 = vpop.f32.mrf.mxu0
    %v849 = vadd.f32 %v659, %v848
    %v850 = vpop.f32.mrf.mxu0
    %851 = vmatprep.mubr.f32.mxu0 0.0
    %v852 = vand.u32 %v108, 4294901760
    %v853 = vsub.f32 %v108, %v852
    %v854 = vand.u32 %v853, 4294901760
    %855 = vmatmul.mubr.f32.gmra.mxu0 %v854
    %v856 = vpop.f32.mrf.mxu0
    %v857 = vadd.f32 %v666, %v856
    %v858 = vpop.f32.mrf.mxu0
    %859 = vmatprep.mubr.f32.mxu0 0.0
    %v860 = vand.u32 %v111, 4294901760
    %v861 = vsub.f32 %v111, %v860
    %v862 = vand.u32 %v861, 4294901760
    %863 = vmatmul.mubr.f32.gmra.mxu0 %v862
    %v864 = vpop.f32.mrf.mxu0
    %v865 = vadd.f32 %v673, %v864
    %v866 = vpop.f32.mrf.mxu0
    %867 = vmatprep.mubr.f32.mxu0 0.0
    %v868 = vand.u32 %v114, 4294901760
    %v869 = vsub.f32 %v114, %v868
    %v870 = vand.u32 %v869, 4294901760
    %871 = vmatmul.mubr.f32.gmra.mxu0 %v870
    %v872 = vpop.f32.mrf.mxu0
    %v873 = vadd.f32 %v680, %v872
    %v874 = vpop.f32.mrf.mxu0
    %875 = vmatprep.mubr.f32.mxu0 0.0
    %v876 = vand.u32 %v117, 4294901760
    %v877 = vsub.f32 %v117, %v876
    %v878 = vand.u32 %v877, 4294901760
    %879 = vmatmul.mubr.f32.gmra.mxu0 %v878
    %v880 = vpop.f32.mrf.mxu0
    %v881 = vadd.f32 %v687, %v880
    %v882 = vpop.f32.mrf.mxu0
    %883 = vdwg.mxu0
    %884 = vmatprep.subr.mxu0 0.0
    %885 = vmatpush1.msra.mxu0 0.0
    %886 = vmatprep.subr.mxu0 0.0
    %887 = vmatpush1.msra.mxu0 0.0
    %888 = vmatprep.subr.mxu0 0.0
    %889 = vmatpush1.msra.mxu0 0.0
    %890 = vmatprep.subr.mxu0 0.0
    %891 = vmatpush1.msra.mxu0 0.0
    %892 = vmatprep.subr.mxu0 0.0
    %893 = vmatpush1.msra.mxu0 0.0
    %894 = vmatprep.subr.mxu0 0.0
    %895 = vmatpush1.msra.mxu0 0.0
    %896 = vmatprep.subr.mxu0 0.0
    %897 = vmatpush1.msra.mxu0 0.0
    %898 = vmatprep.subr.mxu0 0.0
    %899 = vmatpush1.msra.mxu0 0.0
    %900 = vmatprep.subr.mxu0 0.0
    %901 = vmatpush1.msra.mxu0 0.0
    %902 = vmatprep.subr.mxu0 0.0
    %903 = vmatpush1.msra.mxu0 0.0
    %904 = vmatprep.subr.mxu0 0.0
    %905 = vmatpush1.msra.mxu0 0.0
    %906 = vmatprep.subr.mxu0 0.0
    %907 = vmatpush1.msra.mxu0 0.0
    %908 = vmatprep.subr.mxu0 0.0
    %909 = vmatpush1.msra.mxu0 0.0
    %910 = vmatprep.subr.mxu0 0.0
    %911 = vmatpush1.msra.mxu0 0.0
    %912 = vmatprep.subr.mxu0 0.0
    %913 = vmatpush1.msra.mxu0 0.0
    %914 = vmatprep.subr.mxu0 0.0
    %v915 = vand.u32 %v37, 4294901760
    %v916 = vsub.f32 %v37, %v915
    %v917 = vand.u32 %v916, 4294901760
    %918 = vmatpush1.msra.mxu0 %v917
    %919 = vmatprep.subr.mxu0 0.0
    %920 = vmatpush2.msra.mxu0 0.0
    %921 = vmatprep.subr.mxu0 0.0
    %922 = vmatpush2.msra.mxu0 0.0
    %923 = vmatprep.subr.mxu0 0.0
    %924 = vmatpush2.msra.mxu0 0.0
    %925 = vmatprep.subr.mxu0 0.0
    %926 = vmatpush2.msra.mxu0 0.0
    %927 = vmatprep.subr.mxu0 0.0
    %928 = vmatpush2.msra.mxu0 0.0
    %929 = vmatprep.subr.mxu0 0.0
    %930 = vmatpush2.msra.mxu0 0.0
    %931 = vmatprep.subr.mxu0 0.0
    %932 = vmatpush2.msra.mxu0 0.0
    %933 = vmatprep.subr.mxu0 0.0
    %934 = vmatpush2.msra.mxu0 0.0
    %935 = vmatprep.subr.mxu0 0.0
    %936 = vmatpush2.msra.mxu0 0.0
    %937 = vmatprep.subr.mxu0 0.0
    %938 = vmatpush2.msra.mxu0 0.0
    %939 = vmatprep.subr.mxu0 0.0
    %940 = vmatpush2.msra.mxu0 0.0
    %941 = vmatprep.subr.mxu0 0.0
    %942 = vmatpush2.msra.mxu0 0.0
    %943 = vmatprep.subr.mxu0 0.0
    %944 = vmatpush2.msra.mxu0 0.0
    %945 = vmatprep.subr.mxu0 0.0
    %946 = vmatpush2.msra.mxu0 0.0
    %947 = vmatprep.subr.mxu0 0.0
    %948 = vmatpush2.msra.mxu0 0.0
    %949 = vmatprep.subr.mxu0 0.0
    %950 = vmatpush2.msra.mxu0 0.0
    %951 = vmatprep.mubr.f32.mxu0 0.0
    %v952 = vand.u32 %v72, 4294901760
    %953 = vmatmul.mubr.f32.gmra.mxu0 %v952
    %v954 = vpop.f32.mrf.mxu0
    %v955 = vadd.f32 %v761, %v954
    %v956 = vpop.f32.mrf.mxu0
    %957 = vmatprep.mubr.f32.mxu0 0.0
    %v958 = vand.u32 %v75, 4294901760
    %959 = vmatmul.mubr.f32.gmra.mxu0 %v958
    %v960 = vpop.f32.mrf.mxu0
    %v961 = vadd.f32 %v769, %v960
    %v962 = vpop.f32.mrf.mxu0
    %963 = vmatprep.mubr.f32.mxu0 0.0
    %v964 = vand.u32 %v78, 4294901760
    %965 = vmatmul.mubr.f32.gmra.mxu0 %v964
    %v966 = vpop.f32.mrf.mxu0
    %v967 = vadd.f32 %v777, %v966
    %v968 = vpop.f32.mrf.mxu0
    %969 = vmatprep.mubr.f32.mxu0 0.0
    %v970 = vand.u32 %v81, 4294901760
    %971 = vmatmul.mubr.f32.gmra.mxu0 %v970
    %v972 = vpop.f32.mrf.mxu0
    %v973 = vadd.f32 %v785, %v972
    %v974 = vpop.f32.mrf.mxu0
    %975 = vmatprep.mubr.f32.mxu0 0.0
    %v976 = vand.u32 %v84, 4294901760
    %977 = vmatmul.mubr.f32.gmra.mxu0 %v976
    %v978 = vpop.f32.mrf.mxu0
    %v979 = vadd.f32 %v793, %v978
    %v980 = vpop.f32.mrf.mxu0
    %981 = vmatprep.mubr.f32.mxu0 0.0
    %v982 = vand.u32 %v87, 4294901760
    %983 = vmatmul.mubr.f32.gmra.mxu0 %v982
    %v984 = vpop.f32.mrf.mxu0
    %v985 = vadd.f32 %v801, %v984
    %v986 = vpop.f32.mrf.mxu0
    %987 = vmatprep.mubr.f32.mxu0 0.0
    %v988 = vand.u32 %v90, 4294901760
    %989 = vmatmul.mubr.f32.gmra.mxu0 %v988
    %v990 = vpop.f32.mrf.mxu0
    %v991 = vadd.f32 %v809, %v990
    %v992 = vpop.f32.mrf.mxu0
    %993 = vmatprep.mubr.f32.mxu0 0.0
    %v994 = vand.u32 %v93, 4294901760
    %995 = vmatmul.mubr.f32.gmra.mxu0 %v994
    %v996 = vpop.f32.mrf.mxu0
    %v997 = vadd.f32 %v817, %v996
    %v998 = vpop.f32.mrf.mxu0
    %999 = vmatprep.mubr.f32.mxu0 0.0
    %v1000 = vand.u32 %v96, 4294901760
    %1001 = vmatmul.mubr.f32.gmra.mxu0 %v1000
    %v1002 = vpop.f32.mrf.mxu0
    %v1003 = vadd.f32 %v825, %v1002
    %v1004 = vpop.f32.mrf.mxu0
    %1005 = vmatprep.mubr.f32.mxu0 0.0
    %v1006 = vand.u32 %v99, 4294901760
    %1007 = vmatmul.mubr.f32.gmra.mxu0 %v1006
    %v1008 = vpop.f32.mrf.mxu0
    %v1009 = vadd.f32 %v833, %v1008
    %v1010 = vpop.f32.mrf.mxu0
    %1011 = vmatprep.mubr.f32.mxu0 0.0
    %v1012 = vand.u32 %v102, 4294901760
    %1013 = vmatmul.mubr.f32.gmra.mxu0 %v1012
    %v1014 = vpop.f32.mrf.mxu0
    %v1015 = vadd.f32 %v841, %v1014
    %v1016 = vpop.f32.mrf.mxu0
    %1017 = vmatprep.mubr.f32.mxu0 0.0
    %v1018 = vand.u32 %v105, 4294901760
    %1019 = vmatmul.mubr.f32.gmra.mxu0 %v1018
    %v1020 = vpop.f32.mrf.mxu0
    %v1021 = vadd.f32 %v849, %v1020
    %v1022 = vpop.f32.mrf.mxu0
    %1023 = vmatprep.mubr.f32.mxu0 0.0
    %v1024 = vand.u32 %v108, 4294901760
    %1025 = vmatmul.mubr.f32.gmra.mxu0 %v1024
    %v1026 = vpop.f32.mrf.mxu0
    %v1027 = vadd.f32 %v857, %v1026
    %v1028 = vpop.f32.mrf.mxu0
    %1029 = vmatprep.mubr.f32.mxu0 0.0
    %v1030 = vand.u32 %v111, 4294901760
    %1031 = vmatmul.mubr.f32.gmra.mxu0 %v1030
    %v1032 = vpop.f32.mrf.mxu0
    %v1033 = vadd.f32 %v865, %v1032
    %v1034 = vpop.f32.mrf.mxu0
    %1035 = vmatprep.mubr.f32.mxu0 0.0
    %v1036 = vand.u32 %v114, 4294901760
    %1037 = vmatmul.mubr.f32.gmra.mxu0 %v1036
    %v1038 = vpop.f32.mrf.mxu0
    %v1039 = vadd.f32 %v873, %v1038
    %v1040 = vpop.f32.mrf.mxu0
    %1041 = vmatprep.mubr.f32.mxu0 0.0
    %v1042 = vand.u32 %v117, 4294901760
    %1043 = vmatmul.mubr.f32.gmra.mxu0 %v1042
    %v1044 = vpop.f32.mrf.mxu0
    %v1045 = vadd.f32 %v881, %v1044
    %v1046 = vpop.f32.mrf.mxu0
    %1047 = vdwg.mxu0
    %1048 = vmatprep.subr.mxu0 0.0
    %1049 = vmatpush1.msra.mxu0 0.0
    %1050 = vmatprep.subr.mxu0 0.0
    %1051 = vmatpush1.msra.mxu0 0.0
    %1052 = vmatprep.subr.mxu0 0.0
    %1053 = vmatpush1.msra.mxu0 0.0
    %1054 = vmatprep.subr.mxu0 0.0
    %1055 = vmatpush1.msra.mxu0 0.0
    %1056 = vmatprep.subr.mxu0 0.0
    %1057 = vmatpush1.msra.mxu0 0.0
    %1058 = vmatprep.subr.mxu0 0.0
    %1059 = vmatpush1.msra.mxu0 0.0
    %1060 = vmatprep.subr.mxu0 0.0
    %1061 = vmatpush1.msra.mxu0 0.0
    %1062 = vmatprep.subr.mxu0 0.0
    %1063 = vmatpush1.msra.mxu0 0.0
    %1064 = vmatprep.subr.mxu0 0.0
    %1065 = vmatpush1.msra.mxu0 0.0
    %1066 = vmatprep.subr.mxu0 0.0
    %1067 = vmatpush1.msra.mxu0 0.0
    %1068 = vmatprep.subr.mxu0 0.0
    %1069 = vmatpush1.msra.mxu0 0.0
    %1070 = vmatprep.subr.mxu0 0.0
    %1071 = vmatpush1.msra.mxu0 0.0
    %1072 = vmatprep.subr.mxu0 0.0
    %1073 = vmatpush1.msra.mxu0 0.0
    %1074 = vmatprep.subr.mxu0 0.0
    %1075 = vmatpush1.msra.mxu0 0.0
    %1076 = vmatprep.subr.mxu0 0.0
    %1077 = vmatpush1.msra.mxu0 0.0
    %1078 = vmatprep.subr.mxu0 0.0
    %v1079 = vand.u32 %v37, 4294901760
    %1080 = vmatpush1.msra.mxu0 %v1079
    %1081 = vmatprep.subr.mxu0 0.0
    %1082 = vmatpush2.msra.mxu0 0.0
    %1083 = vmatprep.subr.mxu0 0.0
    %1084 = vmatpush2.msra.mxu0 0.0
    %1085 = vmatprep.subr.mxu0 0.0
    %1086 = vmatpush2.msra.mxu0 0.0
    %1087 = vmatprep.subr.mxu0 0.0
    %1088 = vmatpush2.msra.mxu0 0.0
    %1089 = vmatprep.subr.mxu0 0.0
    %1090 = vmatpush2.msra.mxu0 0.0
    %1091 = vmatprep.subr.mxu0 0.0
    %1092 = vmatpush2.msra.mxu0 0.0
    %1093 = vmatprep.subr.mxu0 0.0
    %1094 = vmatpush2.msra.mxu0 0.0
    %1095 = vmatprep.subr.mxu0 0.0
    %1096 = vmatpush2.msra.mxu0 0.0
    %1097 = vmatprep.subr.mxu0 0.0
    %1098 = vmatpush2.msra.mxu0 0.0
    %1099 = vmatprep.subr.mxu0 0.0
    %1100 = vmatpush2.msra.mxu0 0.0
    %1101 = vmatprep.subr.mxu0 0.0
    %1102 = vmatpush2.msra.mxu0 0.0
    %1103 = vmatprep.subr.mxu0 0.0
    %1104 = vmatpush2.msra.mxu0 0.0
    %1105 = vmatprep.subr.mxu0 0.0
    %1106 = vmatpush2.msra.mxu0 0.0
    %1107 = vmatprep.subr.mxu0 0.0
    %1108 = vmatpush2.msra.mxu0 0.0
    %1109 = vmatprep.subr.mxu0 0.0
    %1110 = vmatpush2.msra.mxu0 0.0
    %1111 = vmatprep.subr.mxu0 0.0
    %1112 = vmatpush2.msra.mxu0 0.0
    %1113 = vmatprep.mubr.f32.mxu0 0.0
    %v1114 = vand.u32 %v72, 4294901760
    %1115 = vmatmul.mubr.f32.gmra.mxu0 %v1114
    %v1116 = vpop.f32.mrf.mxu0
    %v1117 = vadd.f32 %v955, %v1116
    %v1118 = vpop.f32.mrf.mxu0
    %1119 = vmatprep.mubr.f32.mxu0 0.0
    %v1120 = vand.u32 %v75, 4294901760
    %1121 = vmatmul.mubr.f32.gmra.mxu0 %v1120
    %v1122 = vpop.f32.mrf.mxu0
    %v1123 = vadd.f32 %v961, %v1122
    %v1124 = vpop.f32.mrf.mxu0
    %1125 = vmatprep.mubr.f32.mxu0 0.0
    %v1126 = vand.u32 %v78, 4294901760
    %1127 = vmatmul.mubr.f32.gmra.mxu0 %v1126
    %v1128 = vpop.f32.mrf.mxu0
    %v1129 = vadd.f32 %v967, %v1128
    %v1130 = vpop.f32.mrf.mxu0
    %1131 = vmatprep.mubr.f32.mxu0 0.0
    %v1132 = vand.u32 %v81, 4294901760
    %1133 = vmatmul.mubr.f32.gmra.mxu0 %v1132
    %v1134 = vpop.f32.mrf.mxu0
    %v1135 = vadd.f32 %v973, %v1134
    %v1136 = vpop.f32.mrf.mxu0
    %1137 = vmatprep.mubr.f32.mxu0 0.0
    %v1138 = vand.u32 %v84, 4294901760
    %1139 = vmatmul.mubr.f32.gmra.mxu0 %v1138
    %v1140 = vpop.f32.mrf.mxu0
    %v1141 = vadd.f32 %v979, %v1140
    %v1142 = vpop.f32.mrf.mxu0
    %1143 = vmatprep.mubr.f32.mxu0 0.0
    %v1144 = vand.u32 %v87, 4294901760
    %1145 = vmatmul.mubr.f32.gmra.mxu0 %v1144
    %v1146 = vpop.f32.mrf.mxu0
    %v1147 = vadd.f32 %v985, %v1146
    %v1148 = vpop.f32.mrf.mxu0
    %1149 = vmatprep.mubr.f32.mxu0 0.0
    %v1150 = vand.u32 %v90, 4294901760
    %1151 = vmatmul.mubr.f32.gmra.mxu0 %v1150
    %v1152 = vpop.f32.mrf.mxu0
    %v1153 = vadd.f32 %v991, %v1152
    %v1154 = vpop.f32.mrf.mxu0
    %1155 = vmatprep.mubr.f32.mxu0 0.0
    %v1156 = vand.u32 %v93, 4294901760
    %1157 = vmatmul.mubr.f32.gmra.mxu0 %v1156
    %v1158 = vpop.f32.mrf.mxu0
    %v1159 = vadd.f32 %v997, %v1158
    %v1160 = vpop.f32.mrf.mxu0
    %1161 = vmatprep.mubr.f32.mxu0 0.0
    %v1162 = vand.u32 %v96, 4294901760
    %1163 = vmatmul.mubr.f32.gmra.mxu0 %v1162
    %v1164 = vpop.f32.mrf.mxu0
    %v1165 = vadd.f32 %v1003, %v1164
    %v1166 = vpop.f32.mrf.mxu0
    %1167 = vmatprep.mubr.f32.mxu0 0.0
    %v1168 = vand.u32 %v99, 4294901760
    %1169 = vmatmul.mubr.f32.gmra.mxu0 %v1168
    %v1170 = vpop.f32.mrf.mxu0
    %v1171 = vadd.f32 %v1009, %v1170
    %v1172 = vpop.f32.mrf.mxu0
    %1173 = vmatprep.mubr.f32.mxu0 0.0
    %v1174 = vand.u32 %v102, 4294901760
    %1175 = vmatmul.mubr.f32.gmra.mxu0 %v1174
    %v1176 = vpop.f32.mrf.mxu0
    %v1177 = vadd.f32 %v1015, %v1176
    %v1178 = vpop.f32.mrf.mxu0
    %1179 = vmatprep.mubr.f32.mxu0 0.0
    %v1180 = vand.u32 %v105, 4294901760
    %1181 = vmatmul.mubr.f32.gmra.mxu0 %v1180
    %v1182 = vpop.f32.mrf.mxu0
    %v1183 = vadd.f32 %v1021, %v1182
    %v1184 = vpop.f32.mrf.mxu0
    %1185 = vmatprep.mubr.f32.mxu0 0.0
    %v1186 = vand.u32 %v108, 4294901760
    %1187 = vmatmul.mubr.f32.gmra.mxu0 %v1186
    %v1188 = vpop.f32.mrf.mxu0
    %v1189 = vadd.f32 %v1027, %v1188
    %v1190 = vpop.f32.mrf.mxu0
    %1191 = vmatprep.mubr.f32.mxu0 0.0
    %v1192 = vand.u32 %v111, 4294901760
    %1193 = vmatmul.mubr.f32.gmra.mxu0 %v1192
    %v1194 = vpop.f32.mrf.mxu0
    %v1195 = vadd.f32 %v1033, %v1194
    %v1196 = vpop.f32.mrf.mxu0
    %1197 = vmatprep.mubr.f32.mxu0 0.0
    %v1198 = vand.u32 %v114, 4294901760
    %1199 = vmatmul.mubr.f32.gmra.mxu0 %v1198
    %v1200 = vpop.f32.mrf.mxu0
    %v1201 = vadd.f32 %v1039, %v1200
    %v1202 = vpop.f32.mrf.mxu0
    %1203 = vmatprep.mubr.f32.mxu0 0.0
    %v1204 = vand.u32 %v117, 4294901760
    %1205 = vmatmul.mubr.f32.gmra.mxu0 %v1204
    %v1206 = vpop.f32.mrf.mxu0
    %v1207 = vadd.f32 %v1045, %v1206
    %v1208 = vpop.f32.mrf.mxu0
    %1209 = vdwg.mxu0
    %v1210 = vand.u32 2147483647, %v1117
    %vm1211 = vcmp.le.f32.partialorder %v1210, 0.7853982
    %vm1212 = vcmp.lt.s32.totalorder %v1117, 0
    %v1213 = vand.u32 %v1117, 2139095040
    %v1214 = vshrl.u32 %v1213, 23
    %v1215 = vsub.s32 %v1214, 127
    %v1216 = vand.u32 2147483647, %v1117
    %v1217 = vand.u32 %v1216, 8388607
    %v1218 = vor.u32 %v1217, 8388608
    %v1219 = vsub.s32 0, %v1218
    %v1220 = vadd.s32 %v1215, 1
    %vm1221 = vcmp.gt.s32.totalorder %v1220, 0
    %v1222 = vsel %vm1221, %v1220, 0
    %v1223 = vshrl.u32 %v1222, 5
    %v1224 = vand.u32 %v1222, 31
    %v1225 = vsub.s32 32, %v1224
    %v1226 = vshrl.u32 683565275, %v1225
    %v1227 = vshll.u32 683565275, %v1224
    %v1228 = vshrl.u32 2475754826, %v1225
    %v1229 = vor.u32 %v1227, %v1228
    %v1230 = vshll.u32 2475754826, %v1224
    %v1231 = vshrl.u32 2131351028, %v1225
    %v1232 = vor.u32 %v1230, %v1231
    %v1233 = vshll.u32 2131351028, %v1224
    %v1234 = vshrl.u32 2102212464, %v1225
    %v1235 = vor.u32 %v1233, %v1234
    %v1236 = vshll.u32 2102212464, %v1224
    %v1237 = vshrl.u32 920167782, %v1225
    %v1238 = vor.u32 %v1236, %v1237
    %v1239 = vshll.u32 920167782, %v1224
    %v1240 = vshrl.u32 1326507024, %v1225
    %v1241 = vor.u32 %v1239, %v1240
    %vm1242 = vcmp.lt.s32.totalorder %v1223, 1
    %vm1243 = vcmp.lt.s32.totalorder %v1223, 2
    %vm1244 = vcmp.lt.s32.totalorder %v1223, 3
    %vm1245 = vcmp.lt.s32.totalorder %v1223, 4
    %v1246 = vsel %vm1242, %v1226, %v1229
    %v1247 = vsel %vm1245, %v1235, 2102212464
    %v1248 = vsel %vm1244, %v1232, %v1247
    %v1249 = vsel %vm1243, %v1246, %v1248
    %v1250 = vsel %vm1242, %v1229, %v1232
    %v1251 = vsel %vm1245, %v1238, 920167782
    %v1252 = vsel %vm1244, %v1235, %v1251
    %v1253 = vsel %vm1243, %v1250, %v1252
    %v1254 = vsel %vm1242, %v1232, %v1235
    %v1255 = vsel %vm1245, %v1241, 1326507024
    %v1256 = vsel %vm1244, %v1238, %v1255
    %v1257 = vsel %vm1243, %v1254, %v1256
    %v1258 = vshll.u32 %v1218, 8
    %v1259 = vmul.u32.u64.compose %v1258, %v1257
    %v1260 = vextract.low.u32 %v1259
    %v1261 = vextract.high.u32 %v1259
    %v1262 = vmul.u32.u64.compose %v1258, %v1253
    %v1263 = vextract.low.u32 %v1262
    %v1264 = vextract.high.u32 %v1262
    %v1265 = vmul.u32 %v1258, %v1249
    %v1266 = vadd.s32 %v1261, %v1263
    %vm1267 = vc.u32 %v1261, %v1263
    %v1268 = vadd.s32 %v1264, 1
    %v1269 = vsel %vm1267, %v1268, %v1264
    %v1270 = vadd.s32 %v1265, %v1269
    %v1271 = vadd.s32 %v1270, 536870912
    %v1272 = vshrl.u32 %v1271, 30
    %v1273 = vshll.u32 %v1272, 30
    %v1274 = vsub.s32 %v1270, %v1273
    %vm1275 = vcmp.lt.s32.totalorder %v1274, 0
    %v1276 = vsub.s32 0, %v1274
    %v1277 = vsel %vm1275, %v1276, %v1274
    %v1278 = vclz %v1277
    %v1279 = vsub.s32 %v1278, 2
    %vm1280 = vcmp.gt.s32.totalorder 0, %v1279
    %v1281 = vsel %vm1280, 0, %v1279
    %v1282 = vsub.s32 32, %v1281
    %v1283 = vshll.u32 %v1274, %v1281
    %v1284 = vshrl.u32 %v1266, %v1282
    %v1285 = vor.u32 %v1283, %v1284
    %v1286 = vsub.s32 4294967266, %v1281
    %v1287 = vadd.s32 %v1286, 127
    %v1288 = vshll.u32 %v1287, 23
    %v1289 = vor.u32 4788187, %v1288
    %v1290 = vand.u32 2147483647, %v1289
    %v1292 = vcvt.s32.f32 %v1285
    %v1293 = vmul.f32 %v1292, %v1290
    %v1294 = vxor.u32 %v1293, 2147483648
    %v1295 = vsel %vm1212, %v1294, %v1293
    %v1296 = vsub.s32 4, %v1272
    %v1297 = vsel %vm1212, %v1296, %v1272
    %v1298 = vsel %vm1211, %v1117, %v1295
    %v1299 = vsel %vm1211, 0, %v1297
    %v1300 = vcosq.f32.pop %v1298
    %v1301 = vsinq.f32.pop %v1298
    %vm1302 = vweird.f32 %v1117
    %v1303 = vadd.s32 %v1299, 3
    %v1304 = vand.u32 %v1303, 3
    %vm1305 = vcmp.lt.s32.totalorder %v1304, 2
    %vm1306 = vcmp.eq.s32.totalorder %v1304, 0
    %v1307 = vxor.u32 %v1301, 2147483648
    %v1308 = vsel %vm1306, %v1300, %v1307
    %vm1309 = vcmp.eq.s32.totalorder %v1304, 2
    %v1310 = vxor.u32 %v1300, 2147483648
    %v1311 = vsel %vm1309, %v1310, %v1301
    %v1312 = vsel %vm1305, %v1308, %v1311
    %v1313 = vsel %vm1302, nan, %v1312
    %v1314 = vand.u32 2147483647, %v1123
    %vm1315 = vcmp.le.f32.partialorder %v1314, 0.7853982
    %vm1316 = vcmp.lt.s32.totalorder %v1123, 0
    %v1317 = vand.u32 %v1123, 2139095040
    %v1318 = vshrl.u32 %v1317, 23
    %v1319 = vsub.s32 %v1318, 127
    %v1320 = vand.u32 2147483647, %v1123
    %v1321 = vand.u32 %v1320, 8388607
    %v1322 = vor.u32 %v1321, 8388608
    %v1323 = vsub.s32 0, %v1322
    %v1324 = vadd.s32 %v1319, 1
    %vm1325 = vcmp.gt.s32.totalorder %v1324, 0
    %v1326 = vsel %vm1325, %v1324, 0
    %v1327 = vshrl.u32 %v1326, 5
    %v1328 = vand.u32 %v1326, 31
    %v1329 = vsub.s32 32, %v1328
    %v1330 = vshrl.u32 683565275, %v1329
    %v1331 = vshll.u32 683565275, %v1328
    %v1332 = vshrl.u32 2475754826, %v1329
    %v1333 = vor.u32 %v1331, %v1332
    %v1334 = vshll.u32 2475754826, %v1328
    %v1335 = vshrl.u32 2131351028, %v1329
    %v1336 = vor.u32 %v1334, %v1335
    %v1337 = vshll.u32 2131351028, %v1328
    %v1338 = vshrl.u32 2102212464, %v1329
    %v1339 = vor.u32 %v1337, %v1338
    %v1340 = vshll.u32 2102212464, %v1328
    %v1341 = vshrl.u32 920167782, %v1329
    %v1342 = vor.u32 %v1340, %v1341
    %v1343 = vshll.u32 920167782, %v1328
    %v1344 = vshrl.u32 1326507024, %v1329
    %v1345 = vor.u32 %v1343, %v1344
    %vm1346 = vcmp.lt.s32.totalorder %v1327, 1
    %vm1347 = vcmp.lt.s32.totalorder %v1327, 2
    %vm1348 = vcmp.lt.s32.totalorder %v1327, 3
    %vm1349 = vcmp.lt.s32.totalorder %v1327, 4
    %v1350 = vsel %vm1346, %v1330, %v1333
    %v1351 = vsel %vm1349, %v1339, 2102212464
    %v1352 = vsel %vm1348, %v1336, %v1351
    %v1353 = vsel %vm1347, %v1350, %v1352
    %v1354 = vsel %vm1346, %v1333, %v1336
    %v1355 = vsel %vm1349, %v1342, 920167782
    %v1356 = vsel %vm1348, %v1339, %v1355
    %v1357 = vsel %vm1347, %v1354, %v1356
    %v1358 = vsel %vm1346, %v1336, %v1339
    %v1359 = vsel %vm1349, %v1345, 1326507024
    %v1360 = vsel %vm1348, %v1342, %v1359
    %v1361 = vsel %vm1347, %v1358, %v1360
    %v1362 = vshll.u32 %v1322, 8
    %v1363 = vmul.u32.u64.compose %v1362, %v1361
    %v1364 = vextract.low.u32 %v1363
    %v1365 = vextract.high.u32 %v1363
    %v1366 = vmul.u32.u64.compose %v1362, %v1357
    %v1367 = vextract.low.u32 %v1366
    %v1368 = vextract.high.u32 %v1366
    %v1369 = vmul.u32 %v1362, %v1353
    %v1370 = vadd.s32 %v1365, %v1367
    %vm1371 = vc.u32 %v1365, %v1367
    %v1372 = vadd.s32 %v1368, 1
    %v1373 = vsel %vm1371, %v1372, %v1368
    %v1374 = vadd.s32 %v1369, %v1373
    %v1375 = vadd.s32 %v1374, 536870912
    %v1376 = vshrl.u32 %v1375, 30
    %v1377 = vshll.u32 %v1376, 30
    %v1378 = vsub.s32 %v1374, %v1377
    %vm1379 = vcmp.lt.s32.totalorder %v1378, 0
    %v1380 = vsub.s32 0, %v1378
    %v1381 = vsel %vm1379, %v1380, %v1378
    %v1382 = vclz %v1381
    %v1383 = vsub.s32 %v1382, 2
    %vm1384 = vcmp.gt.s32.totalorder 0, %v1383
    %v1385 = vsel %vm1384, 0, %v1383
    %v1386 = vsub.s32 32, %v1385
    %v1387 = vshll.u32 %v1378, %v1385
    %v1388 = vshrl.u32 %v1370, %v1386
    %v1389 = vor.u32 %v1387, %v1388
    %v1390 = vsub.s32 4294967266, %v1385
    %v1391 = vadd.s32 %v1390, 127
    %v1392 = vshll.u32 %v1391, 23
    %v1393 = vor.u32 4788187, %v1392
    %v1394 = vand.u32 2147483647, %v1393
    %v1396 = vcvt.s32.f32 %v1389
    %v1397 = vmul.f32 %v1396, %v1394
    %v1398 = vxor.u32 %v1397, 2147483648
    %v1399 = vsel %vm1316, %v1398, %v1397
    %v1400 = vsub.s32 4, %v1376
    %v1401 = vsel %vm1316, %v1400, %v1376
    %v1402 = vsel %vm1315, %v1123, %v1399
    %v1403 = vsel %vm1315, 0, %v1401
    %v1404 = vcosq.f32.pop %v1402
    %v1405 = vsinq.f32.pop %v1402
    %vm1406 = vweird.f32 %v1123
    %v1407 = vadd.s32 %v1403, 3
    %v1408 = vand.u32 %v1407, 3
    %vm1409 = vcmp.lt.s32.totalorder %v1408, 2
    %vm1410 = vcmp.eq.s32.totalorder %v1408, 0
    %v1411 = vxor.u32 %v1405, 2147483648
    %v1412 = vsel %vm1410, %v1404, %v1411
    %vm1413 = vcmp.eq.s32.totalorder %v1408, 2
    %v1414 = vxor.u32 %v1404, 2147483648
    %v1415 = vsel %vm1413, %v1414, %v1405
    %v1416 = vsel %vm1409, %v1412, %v1415
    %v1417 = vsel %vm1406, nan, %v1416
    %v1418 = vand.u32 2147483647, %v1129
    %vm1419 = vcmp.le.f32.partialorder %v1418, 0.7853982
    %vm1420 = vcmp.lt.s32.totalorder %v1129, 0
    %v1421 = vand.u32 %v1129, 2139095040
    %v1422 = vshrl.u32 %v1421, 23
    %v1423 = vsub.s32 %v1422, 127
    %v1424 = vand.u32 2147483647, %v1129
    %v1425 = vand.u32 %v1424, 8388607
    %v1426 = vor.u32 %v1425, 8388608
    %v1427 = vsub.s32 0, %v1426
    %v1428 = vadd.s32 %v1423, 1
    %vm1429 = vcmp.gt.s32.totalorder %v1428, 0
    %v1430 = vsel %vm1429, %v1428, 0
    %v1431 = vshrl.u32 %v1430, 5
    %v1432 = vand.u32 %v1430, 31
    %v1433 = vsub.s32 32, %v1432
    %v1434 = vshrl.u32 683565275, %v1433
    %v1435 = vshll.u32 683565275, %v1432
    %v1436 = vshrl.u32 2475754826, %v1433
    %v1437 = vor.u32 %v1435, %v1436
    %v1438 = vshll.u32 2475754826, %v1432
    %v1439 = vshrl.u32 2131351028, %v1433
    %v1440 = vor.u32 %v1438, %v1439
    %v1441 = vshll.u32 2131351028, %v1432
    %v1442 = vshrl.u32 2102212464, %v1433
    %v1443 = vor.u32 %v1441, %v1442
    %v1444 = vshll.u32 2102212464, %v1432
    %v1445 = vshrl.u32 920167782, %v1433
    %v1446 = vor.u32 %v1444, %v1445
    %v1447 = vshll.u32 920167782, %v1432
    %v1448 = vshrl.u32 1326507024, %v1433
    %v1449 = vor.u32 %v1447, %v1448
    %vm1450 = vcmp.lt.s32.totalorder %v1431, 1
    %vm1451 = vcmp.lt.s32.totalorder %v1431, 2
    %vm1452 = vcmp.lt.s32.totalorder %v1431, 3
    %vm1453 = vcmp.lt.s32.totalorder %v1431, 4
    %v1454 = vsel %vm1450, %v1434, %v1437
    %v1455 = vsel %vm1453, %v1443, 2102212464
    %v1456 = vsel %vm1452, %v1440, %v1455
    %v1457 = vsel %vm1451, %v1454, %v1456
    %v1458 = vsel %vm1450, %v1437, %v1440
    %v1459 = vsel %vm1453, %v1446, 920167782
    %v1460 = vsel %vm1452, %v1443, %v1459
    %v1461 = vsel %vm1451, %v1458, %v1460
    %v1462 = vsel %vm1450, %v1440, %v1443
    %v1463 = vsel %vm1453, %v1449, 1326507024
    %v1464 = vsel %vm1452, %v1446, %v1463
    %v1465 = vsel %vm1451, %v1462, %v1464
    %v1466 = vshll.u32 %v1426, 8
    %v1467 = vmul.u32.u64.compose %v1466, %v1465
    %v1468 = vextract.low.u32 %v1467
    %v1469 = vextract.high.u32 %v1467
    %v1470 = vmul.u32.u64.compose %v1466, %v1461
    %v1471 = vextract.low.u32 %v1470
    %v1472 = vextract.high.u32 %v1470
    %v1473 = vmul.u32 %v1466, %v1457
    %v1474 = vadd.s32 %v1469, %v1471
    %vm1475 = vc.u32 %v1469, %v1471
    %v1476 = vadd.s32 %v1472, 1
    %v1477 = vsel %vm1475, %v1476, %v1472
    %v1478 = vadd.s32 %v1473, %v1477
    %v1479 = vadd.s32 %v1478, 536870912
    %v1480 = vshrl.u32 %v1479, 30
    %v1481 = vshll.u32 %v1480, 30
    %v1482 = vsub.s32 %v1478, %v1481
    %vm1483 = vcmp.lt.s32.totalorder %v1482, 0
    %v1484 = vsub.s32 0, %v1482
    %v1485 = vsel %vm1483, %v1484, %v1482
    %v1486 = vclz %v1485
    %v1487 = vsub.s32 %v1486, 2
    %vm1488 = vcmp.gt.s32.totalorder 0, %v1487
    %v1489 = vsel %vm1488, 0, %v1487
    %v1490 = vsub.s32 32, %v1489
    %v1491 = vshll.u32 %v1482, %v1489
    %v1492 = vshrl.u32 %v1474, %v1490
    %v1493 = vor.u32 %v1491, %v1492
    %v1494 = vsub.s32 4294967266, %v1489
    %v1495 = vadd.s32 %v1494, 127
    %v1496 = vshll.u32 %v1495, 23
    %v1497 = vor.u32 4788187, %v1496
    %v1498 = vand.u32 2147483647, %v1497
    %v1500 = vcvt.s32.f32 %v1493
    %v1501 = vmul.f32 %v1500, %v1498
    %v1502 = vxor.u32 %v1501, 2147483648
    %v1503 = vsel %vm1420, %v1502, %v1501
    %v1504 = vsub.s32 4, %v1480
    %v1505 = vsel %vm1420, %v1504, %v1480
    %v1506 = vsel %vm1419, %v1129, %v1503
    %v1507 = vsel %vm1419, 0, %v1505
    %v1508 = vcosq.f32.pop %v1506
    %v1509 = vsinq.f32.pop %v1506
    %vm1510 = vweird.f32 %v1129
    %v1511 = vadd.s32 %v1507, 3
    %v1512 = vand.u32 %v1511, 3
    %vm1513 = vcmp.lt.s32.totalorder %v1512, 2
    %vm1514 = vcmp.eq.s32.totalorder %v1512, 0
    %v1515 = vxor.u32 %v1509, 2147483648
    %v1516 = vsel %vm1514, %v1508, %v1515
    %vm1517 = vcmp.eq.s32.totalorder %v1512, 2
    %v1518 = vxor.u32 %v1508, 2147483648
    %v1519 = vsel %vm1517, %v1518, %v1509
    %v1520 = vsel %vm1513, %v1516, %v1519
    %v1521 = vsel %vm1510, nan, %v1520
    %v1522 = vand.u32 2147483647, %v1135
    %vm1523 = vcmp.le.f32.partialorder %v1522, 0.7853982
    %vm1524 = vcmp.lt.s32.totalorder %v1135, 0
    %v1525 = vand.u32 %v1135, 2139095040
    %v1526 = vshrl.u32 %v1525, 23
    %v1527 = vsub.s32 %v1526, 127
    %v1528 = vand.u32 2147483647, %v1135
    %v1529 = vand.u32 %v1528, 8388607
    %v1530 = vor.u32 %v1529, 8388608
    %v1531 = vsub.s32 0, %v1530
    %v1532 = vadd.s32 %v1527, 1
    %vm1533 = vcmp.gt.s32.totalorder %v1532, 0
    %v1534 = vsel %vm1533, %v1532, 0
    %v1535 = vshrl.u32 %v1534, 5
    %v1536 = vand.u32 %v1534, 31
    %v1537 = vsub.s32 32, %v1536
    %v1538 = vshrl.u32 683565275, %v1537
    %v1539 = vshll.u32 683565275, %v1536
    %v1540 = vshrl.u32 2475754826, %v1537
    %v1541 = vor.u32 %v1539, %v1540
    %v1542 = vshll.u32 2475754826, %v1536
    %v1543 = vshrl.u32 2131351028, %v1537
    %v1544 = vor.u32 %v1542, %v1543
    %v1545 = vshll.u32 2131351028, %v1536
    %v1546 = vshrl.u32 2102212464, %v1537
    %v1547 = vor.u32 %v1545, %v1546
    %v1548 = vshll.u32 2102212464, %v1536
    %v1549 = vshrl.u32 920167782, %v1537
    %v1550 = vor.u32 %v1548, %v1549
    %v1551 = vshll.u32 920167782, %v1536
    %v1552 = vshrl.u32 1326507024, %v1537
    %v1553 = vor.u32 %v1551, %v1552
    %vm1554 = vcmp.lt.s32.totalorder %v1535, 1
    %vm1555 = vcmp.lt.s32.totalorder %v1535, 2
    %vm1556 = vcmp.lt.s32.totalorder %v1535, 3
    %vm1557 = vcmp.lt.s32.totalorder %v1535, 4
    %v1558 = vsel %vm1554, %v1538, %v1541
    %v1559 = vsel %vm1557, %v1547, 2102212464
    %v1560 = vsel %vm1556, %v1544, %v1559
    %v1561 = vsel %vm1555, %v1558, %v1560
    %v1562 = vsel %vm1554, %v1541, %v1544
    %v1563 = vsel %vm1557, %v1550, 920167782
    %v1564 = vsel %vm1556, %v1547, %v1563
    %v1565 = vsel %vm1555, %v1562, %v1564
    %v1566 = vsel %vm1554, %v1544, %v1547
    %v1567 = vsel %vm1557, %v1553, 1326507024
    %v1568 = vsel %vm1556, %v1550, %v1567
    %v1569 = vsel %vm1555, %v1566, %v1568
    %v1570 = vshll.u32 %v1530, 8
    %v1571 = vmul.u32.u64.compose %v1570, %v1569
    %v1572 = vextract.low.u32 %v1571
    %v1573 = vextract.high.u32 %v1571
    %v1574 = vmul.u32.u64.compose %v1570, %v1565
    %v1575 = vextract.low.u32 %v1574
    %v1576 = vextract.high.u32 %v1574
    %v1577 = vmul.u32 %v1570, %v1561
    %v1578 = vadd.s32 %v1573, %v1575
    %vm1579 = vc.u32 %v1573, %v1575
    %v1580 = vadd.s32 %v1576, 1
    %v1581 = vsel %vm1579, %v1580, %v1576
    %v1582 = vadd.s32 %v1577, %v1581
    %v1583 = vadd.s32 %v1582, 536870912
    %v1584 = vshrl.u32 %v1583, 30
    %v1585 = vshll.u32 %v1584, 30
    %v1586 = vsub.s32 %v1582, %v1585
    %vm1587 = vcmp.lt.s32.totalorder %v1586, 0
    %v1588 = vsub.s32 0, %v1586
    %v1589 = vsel %vm1587, %v1588, %v1586
    %v1590 = vclz %v1589
    %v1591 = vsub.s32 %v1590, 2
    %vm1592 = vcmp.gt.s32.totalorder 0, %v1591
    %v1593 = vsel %vm1592, 0, %v1591
    %v1594 = vsub.s32 32, %v1593
    %v1595 = vshll.u32 %v1586, %v1593
    %v1596 = vshrl.u32 %v1578, %v1594
    %v1597 = vor.u32 %v1595, %v1596
    %v1598 = vsub.s32 4294967266, %v1593
    %v1599 = vadd.s32 %v1598, 127
    %v1600 = vshll.u32 %v1599, 23
    %v1601 = vor.u32 4788187, %v1600
    %v1602 = vand.u32 2147483647, %v1601
    %v1604 = vcvt.s32.f32 %v1597
    %v1605 = vmul.f32 %v1604, %v1602
    %v1606 = vxor.u32 %v1605, 2147483648
    %v1607 = vsel %vm1524, %v1606, %v1605
    %v1608 = vsub.s32 4, %v1584
    %v1609 = vsel %vm1524, %v1608, %v1584
    %v1610 = vsel %vm1523, %v1135, %v1607
    %v1611 = vsel %vm1523, 0, %v1609
    %v1612 = vcosq.f32.pop %v1610
    %v1613 = vsinq.f32.pop %v1610
    %vm1614 = vweird.f32 %v1135
    %v1615 = vadd.s32 %v1611, 3
    %v1616 = vand.u32 %v1615, 3
    %vm1617 = vcmp.lt.s32.totalorder %v1616, 2
    %vm1618 = vcmp.eq.s32.totalorder %v1616, 0
    %v1619 = vxor.u32 %v1613, 2147483648
    %v1620 = vsel %vm1618, %v1612, %v1619
    %vm1621 = vcmp.eq.s32.totalorder %v1616, 2
    %v1622 = vxor.u32 %v1612, 2147483648
    %v1623 = vsel %vm1621, %v1622, %v1613
    %v1624 = vsel %vm1617, %v1620, %v1623
    %v1625 = vsel %vm1614, nan, %v1624
    %v1626 = vand.u32 2147483647, %v1141
    %vm1627 = vcmp.le.f32.partialorder %v1626, 0.7853982
    %vm1628 = vcmp.lt.s32.totalorder %v1141, 0
    %v1629 = vand.u32 %v1141, 2139095040
    %v1630 = vshrl.u32 %v1629, 23
    %v1631 = vsub.s32 %v1630, 127
    %v1632 = vand.u32 2147483647, %v1141
    %v1633 = vand.u32 %v1632, 8388607
    %v1634 = vor.u32 %v1633, 8388608
    %v1635 = vsub.s32 0, %v1634
    %v1636 = vadd.s32 %v1631, 1
    %vm1637 = vcmp.gt.s32.totalorder %v1636, 0
    %v1638 = vsel %vm1637, %v1636, 0
    %v1639 = vshrl.u32 %v1638, 5
    %v1640 = vand.u32 %v1638, 31
    %v1641 = vsub.s32 32, %v1640
    %v1642 = vshrl.u32 683565275, %v1641
    %v1643 = vshll.u32 683565275, %v1640
    %v1644 = vshrl.u32 2475754826, %v1641
    %v1645 = vor.u32 %v1643, %v1644
    %v1646 = vshll.u32 2475754826, %v1640
    %v1647 = vshrl.u32 2131351028, %v1641
    %v1648 = vor.u32 %v1646, %v1647
    %v1649 = vshll.u32 2131351028, %v1640
    %v1650 = vshrl.u32 2102212464, %v1641
    %v1651 = vor.u32 %v1649, %v1650
    %v1652 = vshll.u32 2102212464, %v1640
    %v1653 = vshrl.u32 920167782, %v1641
    %v1654 = vor.u32 %v1652, %v1653
    %v1655 = vshll.u32 920167782, %v1640
    %v1656 = vshrl.u32 1326507024, %v1641
    %v1657 = vor.u32 %v1655, %v1656
    %vm1658 = vcmp.lt.s32.totalorder %v1639, 1
    %vm1659 = vcmp.lt.s32.totalorder %v1639, 2
    %vm1660 = vcmp.lt.s32.totalorder %v1639, 3
    %vm1661 = vcmp.lt.s32.totalorder %v1639, 4
    %v1662 = vsel %vm1658, %v1642, %v1645
    %v1663 = vsel %vm1661, %v1651, 2102212464
    %v1664 = vsel %vm1660, %v1648, %v1663
    %v1665 = vsel %vm1659, %v1662, %v1664
    %v1666 = vsel %vm1658, %v1645, %v1648
    %v1667 = vsel %vm1661, %v1654, 920167782
    %v1668 = vsel %vm1660, %v1651, %v1667
    %v1669 = vsel %vm1659, %v1666, %v1668
    %v1670 = vsel %vm1658, %v1648, %v1651
    %v1671 = vsel %vm1661, %v1657, 1326507024
    %v1672 = vsel %vm1660, %v1654, %v1671
    %v1673 = vsel %vm1659, %v1670, %v1672
    %v1674 = vshll.u32 %v1634, 8
    %v1675 = vmul.u32.u64.compose %v1674, %v1673
    %v1676 = vextract.low.u32 %v1675
    %v1677 = vextract.high.u32 %v1675
    %v1678 = vmul.u32.u64.compose %v1674, %v1669
    %v1679 = vextract.low.u32 %v1678
    %v1680 = vextract.high.u32 %v1678
    %v1681 = vmul.u32 %v1674, %v1665
    %v1682 = vadd.s32 %v1677, %v1679
    %vm1683 = vc.u32 %v1677, %v1679
    %v1684 = vadd.s32 %v1680, 1
    %v1685 = vsel %vm1683, %v1684, %v1680
    %v1686 = vadd.s32 %v1681, %v1685
    %v1687 = vadd.s32 %v1686, 536870912
    %v1688 = vshrl.u32 %v1687, 30
    %v1689 = vshll.u32 %v1688, 30
    %v1690 = vsub.s32 %v1686, %v1689
    %vm1691 = vcmp.lt.s32.totalorder %v1690, 0
    %v1692 = vsub.s32 0, %v1690
    %v1693 = vsel %vm1691, %v1692, %v1690
    %v1694 = vclz %v1693
    %v1695 = vsub.s32 %v1694, 2
    %vm1696 = vcmp.gt.s32.totalorder 0, %v1695
    %v1697 = vsel %vm1696, 0, %v1695
    %v1698 = vsub.s32 32, %v1697
    %v1699 = vshll.u32 %v1690, %v1697
    %v1700 = vshrl.u32 %v1682, %v1698
    %v1701 = vor.u32 %v1699, %v1700
    %v1702 = vsub.s32 4294967266, %v1697
    %v1703 = vadd.s32 %v1702, 127
    %v1704 = vshll.u32 %v1703, 23
    %v1705 = vor.u32 4788187, %v1704
    %v1706 = vand.u32 2147483647, %v1705
    %v1708 = vcvt.s32.f32 %v1701
    %v1709 = vmul.f32 %v1708, %v1706
    %v1710 = vxor.u32 %v1709, 2147483648
    %v1711 = vsel %vm1628, %v1710, %v1709
    %v1712 = vsub.s32 4, %v1688
    %v1713 = vsel %vm1628, %v1712, %v1688
    %v1714 = vsel %vm1627, %v1141, %v1711
    %v1715 = vsel %vm1627, 0, %v1713
    %v1716 = vcosq.f32.pop %v1714
    %v1717 = vsinq.f32.pop %v1714
    %vm1718 = vweird.f32 %v1141
    %v1719 = vadd.s32 %v1715, 3
    %v1720 = vand.u32 %v1719, 3
    %vm1721 = vcmp.lt.s32.totalorder %v1720, 2
    %vm1722 = vcmp.eq.s32.totalorder %v1720, 0
    %v1723 = vxor.u32 %v1717, 2147483648
    %v1724 = vsel %vm1722, %v1716, %v1723
    %vm1725 = vcmp.eq.s32.totalorder %v1720, 2
    %v1726 = vxor.u32 %v1716, 2147483648
    %v1727 = vsel %vm1725, %v1726, %v1717
    %v1728 = vsel %vm1721, %v1724, %v1727
    %v1729 = vsel %vm1718, nan, %v1728
    %v1730 = vand.u32 2147483647, %v1147
    %vm1731 = vcmp.le.f32.partialorder %v1730, 0.7853982
    %vm1732 = vcmp.lt.s32.totalorder %v1147, 0
    %v1733 = vand.u32 %v1147, 2139095040
    %v1734 = vshrl.u32 %v1733, 23
    %v1735 = vsub.s32 %v1734, 127
    %v1736 = vand.u32 2147483647, %v1147
    %v1737 = vand.u32 %v1736, 8388607
    %v1738 = vor.u32 %v1737, 8388608
    %v1739 = vsub.s32 0, %v1738
    %v1740 = vadd.s32 %v1735, 1
    %vm1741 = vcmp.gt.s32.totalorder %v1740, 0
    %v1742 = vsel %vm1741, %v1740, 0
    %v1743 = vshrl.u32 %v1742, 5
    %v1744 = vand.u32 %v1742, 31
    %v1745 = vsub.s32 32, %v1744
    %v1746 = vshrl.u32 683565275, %v1745
    %v1747 = vshll.u32 683565275, %v1744
    %v1748 = vshrl.u32 2475754826, %v1745
    %v1749 = vor.u32 %v1747, %v1748
    %v1750 = vshll.u32 2475754826, %v1744
    %v1751 = vshrl.u32 2131351028, %v1745
    %v1752 = vor.u32 %v1750, %v1751
    %v1753 = vshll.u32 2131351028, %v1744
    %v1754 = vshrl.u32 2102212464, %v1745
    %v1755 = vor.u32 %v1753, %v1754
    %v1756 = vshll.u32 2102212464, %v1744
    %v1757 = vshrl.u32 920167782, %v1745
    %v1758 = vor.u32 %v1756, %v1757
    %v1759 = vshll.u32 920167782, %v1744
    %v1760 = vshrl.u32 1326507024, %v1745
    %v1761 = vor.u32 %v1759, %v1760
    %vm1762 = vcmp.lt.s32.totalorder %v1743, 1
    %vm1763 = vcmp.lt.s32.totalorder %v1743, 2
    %vm1764 = vcmp.lt.s32.totalorder %v1743, 3
    %vm1765 = vcmp.lt.s32.totalorder %v1743, 4
    %v1766 = vsel %vm1762, %v1746, %v1749
    %v1767 = vsel %vm1765, %v1755, 2102212464
    %v1768 = vsel %vm1764, %v1752, %v1767
    %v1769 = vsel %vm1763, %v1766, %v1768
    %v1770 = vsel %vm1762, %v1749, %v1752
    %v1771 = vsel %vm1765, %v1758, 920167782
    %v1772 = vsel %vm1764, %v1755, %v1771
    %v1773 = vsel %vm1763, %v1770, %v1772
    %v1774 = vsel %vm1762, %v1752, %v1755
    %v1775 = vsel %vm1765, %v1761, 1326507024
    %v1776 = vsel %vm1764, %v1758, %v1775
    %v1777 = vsel %vm1763, %v1774, %v1776
    %v1778 = vshll.u32 %v1738, 8
    %v1779 = vmul.u32.u64.compose %v1778, %v1777
    %v1780 = vextract.low.u32 %v1779
    %v1781 = vextract.high.u32 %v1779
    %v1782 = vmul.u32.u64.compose %v1778, %v1773
    %v1783 = vextract.low.u32 %v1782
    %v1784 = vextract.high.u32 %v1782
    %v1785 = vmul.u32 %v1778, %v1769
    %v1786 = vadd.s32 %v1781, %v1783
    %vm1787 = vc.u32 %v1781, %v1783
    %v1788 = vadd.s32 %v1784, 1
    %v1789 = vsel %vm1787, %v1788, %v1784
    %v1790 = vadd.s32 %v1785, %v1789
    %v1791 = vadd.s32 %v1790, 536870912
    %v1792 = vshrl.u32 %v1791, 30
    %v1793 = vshll.u32 %v1792, 30
    %v1794 = vsub.s32 %v1790, %v1793
    %vm1795 = vcmp.lt.s32.totalorder %v1794, 0
    %v1796 = vsub.s32 0, %v1794
    %v1797 = vsel %vm1795, %v1796, %v1794
    %v1798 = vclz %v1797
    %v1799 = vsub.s32 %v1798, 2
    %vm1800 = vcmp.gt.s32.totalorder 0, %v1799
    %v1801 = vsel %vm1800, 0, %v1799
    %v1802 = vsub.s32 32, %v1801
    %v1803 = vshll.u32 %v1794, %v1801
    %v1804 = vshrl.u32 %v1786, %v1802
    %v1805 = vor.u32 %v1803, %v1804
    %v1806 = vsub.s32 4294967266, %v1801
    %v1807 = vadd.s32 %v1806, 127
    %v1808 = vshll.u32 %v1807, 23
    %v1809 = vor.u32 4788187, %v1808
    %v1810 = vand.u32 2147483647, %v1809
    %v1812 = vcvt.s32.f32 %v1805
    %v1813 = vmul.f32 %v1812, %v1810
    %v1814 = vxor.u32 %v1813, 2147483648
    %v1815 = vsel %vm1732, %v1814, %v1813
    %v1816 = vsub.s32 4, %v1792
    %v1817 = vsel %vm1732, %v1816, %v1792
    %v1818 = vsel %vm1731, %v1147, %v1815
    %v1819 = vsel %vm1731, 0, %v1817
    %v1820 = vcosq.f32.pop %v1818
    %v1821 = vsinq.f32.pop %v1818
    %vm1822 = vweird.f32 %v1147
    %v1823 = vadd.s32 %v1819, 3
    %v1824 = vand.u32 %v1823, 3
    %vm1825 = vcmp.lt.s32.totalorder %v1824, 2
    %vm1826 = vcmp.eq.s32.totalorder %v1824, 0
    %v1827 = vxor.u32 %v1821, 2147483648
    %v1828 = vsel %vm1826, %v1820, %v1827
    %vm1829 = vcmp.eq.s32.totalorder %v1824, 2
    %v1830 = vxor.u32 %v1820, 2147483648
    %v1831 = vsel %vm1829, %v1830, %v1821
    %v1832 = vsel %vm1825, %v1828, %v1831
    %v1833 = vsel %vm1822, nan, %v1832
    %v1834 = vand.u32 2147483647, %v1153
    %vm1835 = vcmp.le.f32.partialorder %v1834, 0.7853982
    %vm1836 = vcmp.lt.s32.totalorder %v1153, 0
    %v1837 = vand.u32 %v1153, 2139095040
    %v1838 = vshrl.u32 %v1837, 23
    %v1839 = vsub.s32 %v1838, 127
    %v1840 = vand.u32 2147483647, %v1153
    %v1841 = vand.u32 %v1840, 8388607
    %v1842 = vor.u32 %v1841, 8388608
    %v1843 = vsub.s32 0, %v1842
    %v1844 = vadd.s32 %v1839, 1
    %vm1845 = vcmp.gt.s32.totalorder %v1844, 0
    %v1846 = vsel %vm1845, %v1844, 0
    %v1847 = vshrl.u32 %v1846, 5
    %v1848 = vand.u32 %v1846, 31
    %v1849 = vsub.s32 32, %v1848
    %v1850 = vshrl.u32 683565275, %v1849
    %v1851 = vshll.u32 683565275, %v1848
    %v1852 = vshrl.u32 2475754826, %v1849
    %v1853 = vor.u32 %v1851, %v1852
    %v1854 = vshll.u32 2475754826, %v1848
    %v1855 = vshrl.u32 2131351028, %v1849
    %v1856 = vor.u32 %v1854, %v1855
    %v1857 = vshll.u32 2131351028, %v1848
    %v1858 = vshrl.u32 2102212464, %v1849
    %v1859 = vor.u32 %v1857, %v1858
    %v1860 = vshll.u32 2102212464, %v1848
    %v1861 = vshrl.u32 920167782, %v1849
    %v1862 = vor.u32 %v1860, %v1861
    %v1863 = vshll.u32 920167782, %v1848
    %v1864 = vshrl.u32 1326507024, %v1849
    %v1865 = vor.u32 %v1863, %v1864
    %vm1866 = vcmp.lt.s32.totalorder %v1847, 1
    %vm1867 = vcmp.lt.s32.totalorder %v1847, 2
    %vm1868 = vcmp.lt.s32.totalorder %v1847, 3
    %vm1869 = vcmp.lt.s32.totalorder %v1847, 4
    %v1870 = vsel %vm1866, %v1850, %v1853
    %v1871 = vsel %vm1869, %v1859, 2102212464
    %v1872 = vsel %vm1868, %v1856, %v1871
    %v1873 = vsel %vm1867, %v1870, %v1872
    %v1874 = vsel %vm1866, %v1853, %v1856
    %v1875 = vsel %vm1869, %v1862, 920167782
    %v1876 = vsel %vm1868, %v1859, %v1875
    %v1877 = vsel %vm1867, %v1874, %v1876
    %v1878 = vsel %vm1866, %v1856, %v1859
    %v1879 = vsel %vm1869, %v1865, 1326507024
    %v1880 = vsel %vm1868, %v1862, %v1879
    %v1881 = vsel %vm1867, %v1878, %v1880
    %v1882 = vshll.u32 %v1842, 8
    %v1883 = vmul.u32.u64.compose %v1882, %v1881
    %v1884 = vextract.low.u32 %v1883
    %v1885 = vextract.high.u32 %v1883
    %v1886 = vmul.u32.u64.compose %v1882, %v1877
    %v1887 = vextract.low.u32 %v1886
    %v1888 = vextract.high.u32 %v1886
    %v1889 = vmul.u32 %v1882, %v1873
    %v1890 = vadd.s32 %v1885, %v1887
    %vm1891 = vc.u32 %v1885, %v1887
    %v1892 = vadd.s32 %v1888, 1
    %v1893 = vsel %vm1891, %v1892, %v1888
    %v1894 = vadd.s32 %v1889, %v1893
    %v1895 = vadd.s32 %v1894, 536870912
    %v1896 = vshrl.u32 %v1895, 30
    %v1897 = vshll.u32 %v1896, 30
    %v1898 = vsub.s32 %v1894, %v1897
    %vm1899 = vcmp.lt.s32.totalorder %v1898, 0
    %v1900 = vsub.s32 0, %v1898
    %v1901 = vsel %vm1899, %v1900, %v1898
    %v1902 = vclz %v1901
    %v1903 = vsub.s32 %v1902, 2
    %vm1904 = vcmp.gt.s32.totalorder 0, %v1903
    %v1905 = vsel %vm1904, 0, %v1903
    %v1906 = vsub.s32 32, %v1905
    %v1907 = vshll.u32 %v1898, %v1905
    %v1908 = vshrl.u32 %v1890, %v1906
    %v1909 = vor.u32 %v1907, %v1908
    %v1910 = vsub.s32 4294967266, %v1905
    %v1911 = vadd.s32 %v1910, 127
    %v1912 = vshll.u32 %v1911, 23
    %v1913 = vor.u32 4788187, %v1912
    %v1914 = vand.u32 2147483647, %v1913
    %v1916 = vcvt.s32.f32 %v1909
    %v1917 = vmul.f32 %v1916, %v1914
    %v1918 = vxor.u32 %v1917, 2147483648
    %v1919 = vsel %vm1836, %v1918, %v1917
    %v1920 = vsub.s32 4, %v1896
    %v1921 = vsel %vm1836, %v1920, %v1896
    %v1922 = vsel %vm1835, %v1153, %v1919
    %v1923 = vsel %vm1835, 0, %v1921
    %v1924 = vcosq.f32.pop %v1922
    %v1925 = vsinq.f32.pop %v1922
    %vm1926 = vweird.f32 %v1153
    %v1927 = vadd.s32 %v1923, 3
    %v1928 = vand.u32 %v1927, 3
    %vm1929 = vcmp.lt.s32.totalorder %v1928, 2
    %vm1930 = vcmp.eq.s32.totalorder %v1928, 0
    %v1931 = vxor.u32 %v1925, 2147483648
    %v1932 = vsel %vm1930, %v1924, %v1931
    %vm1933 = vcmp.eq.s32.totalorder %v1928, 2
    %v1934 = vxor.u32 %v1924, 2147483648
    %v1935 = vsel %vm1933, %v1934, %v1925
    %v1936 = vsel %vm1929, %v1932, %v1935
    %v1937 = vsel %vm1926, nan, %v1936
    %v1938 = vand.u32 2147483647, %v1159
    %vm1939 = vcmp.le.f32.partialorder %v1938, 0.7853982
    %vm1940 = vcmp.lt.s32.totalorder %v1159, 0
    %v1941 = vand.u32 %v1159, 2139095040
    %v1942 = vshrl.u32 %v1941, 23
    %v1943 = vsub.s32 %v1942, 127
    %v1944 = vand.u32 2147483647, %v1159
    %v1945 = vand.u32 %v1944, 8388607
    %v1946 = vor.u32 %v1945, 8388608
    %v1947 = vsub.s32 0, %v1946
    %v1948 = vadd.s32 %v1943, 1
    %vm1949 = vcmp.gt.s32.totalorder %v1948, 0
    %v1950 = vsel %vm1949, %v1948, 0
    %v1951 = vshrl.u32 %v1950, 5
    %v1952 = vand.u32 %v1950, 31
    %v1953 = vsub.s32 32, %v1952
    %v1954 = vshrl.u32 683565275, %v1953
    %v1955 = vshll.u32 683565275, %v1952
    %v1956 = vshrl.u32 2475754826, %v1953
    %v1957 = vor.u32 %v1955, %v1956
    %v1958 = vshll.u32 2475754826, %v1952
    %v1959 = vshrl.u32 2131351028, %v1953
    %v1960 = vor.u32 %v1958, %v1959
    %v1961 = vshll.u32 2131351028, %v1952
    %v1962 = vshrl.u32 2102212464, %v1953
    %v1963 = vor.u32 %v1961, %v1962
    %v1964 = vshll.u32 2102212464, %v1952
    %v1965 = vshrl.u32 920167782, %v1953
    %v1966 = vor.u32 %v1964, %v1965
    %v1967 = vshll.u32 920167782, %v1952
    %v1968 = vshrl.u32 1326507024, %v1953
    %v1969 = vor.u32 %v1967, %v1968
    %vm1970 = vcmp.lt.s32.totalorder %v1951, 1
    %vm1971 = vcmp.lt.s32.totalorder %v1951, 2
    %vm1972 = vcmp.lt.s32.totalorder %v1951, 3
    %vm1973 = vcmp.lt.s32.totalorder %v1951, 4
    %v1974 = vsel %vm1970, %v1954, %v1957
    %v1975 = vsel %vm1973, %v1963, 2102212464
    %v1976 = vsel %vm1972, %v1960, %v1975
    %v1977 = vsel %vm1971, %v1974, %v1976
    %v1978 = vsel %vm1970, %v1957, %v1960
    %v1979 = vsel %vm1973, %v1966, 920167782
    %v1980 = vsel %vm1972, %v1963, %v1979
    %v1981 = vsel %vm1971, %v1978, %v1980
    %v1982 = vsel %vm1970, %v1960, %v1963
    %v1983 = vsel %vm1973, %v1969, 1326507024
    %v1984 = vsel %vm1972, %v1966, %v1983
    %v1985 = vsel %vm1971, %v1982, %v1984
    %v1986 = vshll.u32 %v1946, 8
    %v1987 = vmul.u32.u64.compose %v1986, %v1985
    %v1988 = vextract.low.u32 %v1987
    %v1989 = vextract.high.u32 %v1987
    %v1990 = vmul.u32.u64.compose %v1986, %v1981
    %v1991 = vextract.low.u32 %v1990
    %v1992 = vextract.high.u32 %v1990
    %v1993 = vmul.u32 %v1986, %v1977
    %v1994 = vadd.s32 %v1989, %v1991
    %vm1995 = vc.u32 %v1989, %v1991
    %v1996 = vadd.s32 %v1992, 1
    %v1997 = vsel %vm1995, %v1996, %v1992
    %v1998 = vadd.s32 %v1993, %v1997
    %v1999 = vadd.s32 %v1998, 536870912
    %v2000 = vshrl.u32 %v1999, 30
    %v2001 = vshll.u32 %v2000, 30
    %v2002 = vsub.s32 %v1998, %v2001
    %vm2003 = vcmp.lt.s32.totalorder %v2002, 0
    %v2004 = vsub.s32 0, %v2002
    %v2005 = vsel %vm2003, %v2004, %v2002
    %v2006 = vclz %v2005
    %v2007 = vsub.s32 %v2006, 2
    %vm2008 = vcmp.gt.s32.totalorder 0, %v2007
    %v2009 = vsel %vm2008, 0, %v2007
    %v2010 = vsub.s32 32, %v2009
    %v2011 = vshll.u32 %v2002, %v2009
    %v2012 = vshrl.u32 %v1994, %v2010
    %v2013 = vor.u32 %v2011, %v2012
    %v2014 = vsub.s32 4294967266, %v2009
    %v2015 = vadd.s32 %v2014, 127
    %v2016 = vshll.u32 %v2015, 23
    %v2017 = vor.u32 4788187, %v2016
    %v2018 = vand.u32 2147483647, %v2017
    %v2020 = vcvt.s32.f32 %v2013
    %v2021 = vmul.f32 %v2020, %v2018
    %v2022 = vxor.u32 %v2021, 2147483648
    %v2023 = vsel %vm1940, %v2022, %v2021
    %v2024 = vsub.s32 4, %v2000
    %v2025 = vsel %vm1940, %v2024, %v2000
    %v2026 = vsel %vm1939, %v1159, %v2023
    %v2027 = vsel %vm1939, 0, %v2025
    %v2028 = vcosq.f32.pop %v2026
    %v2029 = vsinq.f32.pop %v2026
    %vm2030 = vweird.f32 %v1159
    %v2031 = vadd.s32 %v2027, 3
    %v2032 = vand.u32 %v2031, 3
    %vm2033 = vcmp.lt.s32.totalorder %v2032, 2
    %vm2034 = vcmp.eq.s32.totalorder %v2032, 0
    %v2035 = vxor.u32 %v2029, 2147483648
    %v2036 = vsel %vm2034, %v2028, %v2035
    %vm2037 = vcmp.eq.s32.totalorder %v2032, 2
    %v2038 = vxor.u32 %v2028, 2147483648
    %v2039 = vsel %vm2037, %v2038, %v2029
    %v2040 = vsel %vm2033, %v2036, %v2039
    %v2041 = vsel %vm2030, nan, %v2040
    %v2042 = vand.u32 2147483647, %v1165
    %vm2043 = vcmp.le.f32.partialorder %v2042, 0.7853982
    %vm2044 = vcmp.lt.s32.totalorder %v1165, 0
    %v2045 = vand.u32 %v1165, 2139095040
    %v2046 = vshrl.u32 %v2045, 23
    %v2047 = vsub.s32 %v2046, 127
    %v2048 = vand.u32 2147483647, %v1165
    %v2049 = vand.u32 %v2048, 8388607
    %v2050 = vor.u32 %v2049, 8388608
    %v2051 = vsub.s32 0, %v2050
    %v2052 = vadd.s32 %v2047, 1
    %vm2053 = vcmp.gt.s32.totalorder %v2052, 0
    %v2054 = vsel %vm2053, %v2052, 0
    %v2055 = vshrl.u32 %v2054, 5
    %v2056 = vand.u32 %v2054, 31
    %v2057 = vsub.s32 32, %v2056
    %v2058 = vshrl.u32 683565275, %v2057
    %v2059 = vshll.u32 683565275, %v2056
    %v2060 = vshrl.u32 2475754826, %v2057
    %v2061 = vor.u32 %v2059, %v2060
    %v2062 = vshll.u32 2475754826, %v2056
    %v2063 = vshrl.u32 2131351028, %v2057
    %v2064 = vor.u32 %v2062, %v2063
    %v2065 = vshll.u32 2131351028, %v2056
    %v2066 = vshrl.u32 2102212464, %v2057
    %v2067 = vor.u32 %v2065, %v2066
    %v2068 = vshll.u32 2102212464, %v2056
    %v2069 = vshrl.u32 920167782, %v2057
    %v2070 = vor.u32 %v2068, %v2069
    %v2071 = vshll.u32 920167782, %v2056
    %v2072 = vshrl.u32 1326507024, %v2057
    %v2073 = vor.u32 %v2071, %v2072
    %vm2074 = vcmp.lt.s32.totalorder %v2055, 1
    %vm2075 = vcmp.lt.s32.totalorder %v2055, 2
    %vm2076 = vcmp.lt.s32.totalorder %v2055, 3
    %vm2077 = vcmp.lt.s32.totalorder %v2055, 4
    %v2078 = vsel %vm2074, %v2058, %v2061
    %v2079 = vsel %vm2077, %v2067, 2102212464
    %v2080 = vsel %vm2076, %v2064, %v2079
    %v2081 = vsel %vm2075, %v2078, %v2080
    %v2082 = vsel %vm2074, %v2061, %v2064
    %v2083 = vsel %vm2077, %v2070, 920167782
    %v2084 = vsel %vm2076, %v2067, %v2083
    %v2085 = vsel %vm2075, %v2082, %v2084
    %v2086 = vsel %vm2074, %v2064, %v2067
    %v2087 = vsel %vm2077, %v2073, 1326507024
    %v2088 = vsel %vm2076, %v2070, %v2087
    %v2089 = vsel %vm2075, %v2086, %v2088
    %v2090 = vshll.u32 %v2050, 8
    %v2091 = vmul.u32.u64.compose %v2090, %v2089
    %v2092 = vextract.low.u32 %v2091
    %v2093 = vextract.high.u32 %v2091
    %v2094 = vmul.u32.u64.compose %v2090, %v2085
    %v2095 = vextract.low.u32 %v2094
    %v2096 = vextract.high.u32 %v2094
    %v2097 = vmul.u32 %v2090, %v2081
    %v2098 = vadd.s32 %v2093, %v2095
    %vm2099 = vc.u32 %v2093, %v2095
    %v2100 = vadd.s32 %v2096, 1
    %v2101 = vsel %vm2099, %v2100, %v2096
    %v2102 = vadd.s32 %v2097, %v2101
    %v2103 = vadd.s32 %v2102, 536870912
    %v2104 = vshrl.u32 %v2103, 30
    %v2105 = vshll.u32 %v2104, 30
    %v2106 = vsub.s32 %v2102, %v2105
    %vm2107 = vcmp.lt.s32.totalorder %v2106, 0
    %v2108 = vsub.s32 0, %v2106
    %v2109 = vsel %vm2107, %v2108, %v2106
    %v2110 = vclz %v2109
    %v2111 = vsub.s32 %v2110, 2
    %vm2112 = vcmp.gt.s32.totalorder 0, %v2111
    %v2113 = vsel %vm2112, 0, %v2111
    %v2114 = vsub.s32 32, %v2113
    %v2115 = vshll.u32 %v2106, %v2113
    %v2116 = vshrl.u32 %v2098, %v2114
    %v2117 = vor.u32 %v2115, %v2116
    %v2118 = vsub.s32 4294967266, %v2113
    %v2119 = vadd.s32 %v2118, 127
    %v2120 = vshll.u32 %v2119, 23
    %v2121 = vor.u32 4788187, %v2120
    %v2122 = vand.u32 2147483647, %v2121
    %v2124 = vcvt.s32.f32 %v2117
    %v2125 = vmul.f32 %v2124, %v2122
    %v2126 = vxor.u32 %v2125, 2147483648
    %v2127 = vsel %vm2044, %v2126, %v2125
    %v2128 = vsub.s32 4, %v2104
    %v2129 = vsel %vm2044, %v2128, %v2104
    %v2130 = vsel %vm2043, %v1165, %v2127
    %v2131 = vsel %vm2043, 0, %v2129
    %v2132 = vcosq.f32.pop %v2130
    %v2133 = vsinq.f32.pop %v2130
    %vm2134 = vweird.f32 %v1165
    %v2135 = vadd.s32 %v2131, 3
    %v2136 = vand.u32 %v2135, 3
    %vm2137 = vcmp.lt.s32.totalorder %v2136, 2
    %vm2138 = vcmp.eq.s32.totalorder %v2136, 0
    %v2139 = vxor.u32 %v2133, 2147483648
    %v2140 = vsel %vm2138, %v2132, %v2139
    %vm2141 = vcmp.eq.s32.totalorder %v2136, 2
    %v2142 = vxor.u32 %v2132, 2147483648
    %v2143 = vsel %vm2141, %v2142, %v2133
    %v2144 = vsel %vm2137, %v2140, %v2143
    %v2145 = vsel %vm2134, nan, %v2144
    %v2146 = vand.u32 2147483647, %v1171
    %vm2147 = vcmp.le.f32.partialorder %v2146, 0.7853982
    %vm2148 = vcmp.lt.s32.totalorder %v1171, 0
    %v2149 = vand.u32 %v1171, 2139095040
    %v2150 = vshrl.u32 %v2149, 23
    %v2151 = vsub.s32 %v2150, 127
    %v2152 = vand.u32 2147483647, %v1171
    %v2153 = vand.u32 %v2152, 8388607
    %v2154 = vor.u32 %v2153, 8388608
    %v2155 = vsub.s32 0, %v2154
    %v2156 = vadd.s32 %v2151, 1
    %vm2157 = vcmp.gt.s32.totalorder %v2156, 0
    %v2158 = vsel %vm2157, %v2156, 0
    %v2159 = vshrl.u32 %v2158, 5
    %v2160 = vand.u32 %v2158, 31
    %v2161 = vsub.s32 32, %v2160
    %v2162 = vshrl.u32 683565275, %v2161
    %v2163 = vshll.u32 683565275, %v2160
    %v2164 = vshrl.u32 2475754826, %v2161
    %v2165 = vor.u32 %v2163, %v2164
    %v2166 = vshll.u32 2475754826, %v2160
    %v2167 = vshrl.u32 2131351028, %v2161
    %v2168 = vor.u32 %v2166, %v2167
    %v2169 = vshll.u32 2131351028, %v2160
    %v2170 = vshrl.u32 2102212464, %v2161
    %v2171 = vor.u32 %v2169, %v2170
    %v2172 = vshll.u32 2102212464, %v2160
    %v2173 = vshrl.u32 920167782, %v2161
    %v2174 = vor.u32 %v2172, %v2173
    %v2175 = vshll.u32 920167782, %v2160
    %v2176 = vshrl.u32 1326507024, %v2161
    %v2177 = vor.u32 %v2175, %v2176
    %vm2178 = vcmp.lt.s32.totalorder %v2159, 1
    %vm2179 = vcmp.lt.s32.totalorder %v2159, 2
    %vm2180 = vcmp.lt.s32.totalorder %v2159, 3
    %vm2181 = vcmp.lt.s32.totalorder %v2159, 4
    %v2182 = vsel %vm2178, %v2162, %v2165
    %v2183 = vsel %vm2181, %v2171, 2102212464
    %v2184 = vsel %vm2180, %v2168, %v2183
    %v2185 = vsel %vm2179, %v2182, %v2184
    %v2186 = vsel %vm2178, %v2165, %v2168
    %v2187 = vsel %vm2181, %v2174, 920167782
    %v2188 = vsel %vm2180, %v2171, %v2187
    %v2189 = vsel %vm2179, %v2186, %v2188
    %v2190 = vsel %vm2178, %v2168, %v2171
    %v2191 = vsel %vm2181, %v2177, 1326507024
    %v2192 = vsel %vm2180, %v2174, %v2191
    %v2193 = vsel %vm2179, %v2190, %v2192
    %v2194 = vshll.u32 %v2154, 8
    %v2195 = vmul.u32.u64.compose %v2194, %v2193
    %v2196 = vextract.low.u32 %v2195
    %v2197 = vextract.high.u32 %v2195
    %v2198 = vmul.u32.u64.compose %v2194, %v2189
    %v2199 = vextract.low.u32 %v2198
    %v2200 = vextract.high.u32 %v2198
    %v2201 = vmul.u32 %v2194, %v2185
    %v2202 = vadd.s32 %v2197, %v2199
    %vm2203 = vc.u32 %v2197, %v2199
    %v2204 = vadd.s32 %v2200, 1
    %v2205 = vsel %vm2203, %v2204, %v2200
    %v2206 = vadd.s32 %v2201, %v2205
    %v2207 = vadd.s32 %v2206, 536870912
    %v2208 = vshrl.u32 %v2207, 30
    %v2209 = vshll.u32 %v2208, 30
    %v2210 = vsub.s32 %v2206, %v2209
    %vm2211 = vcmp.lt.s32.totalorder %v2210, 0
    %v2212 = vsub.s32 0, %v2210
    %v2213 = vsel %vm2211, %v2212, %v2210
    %v2214 = vclz %v2213
    %v2215 = vsub.s32 %v2214, 2
    %vm2216 = vcmp.gt.s32.totalorder 0, %v2215
    %v2217 = vsel %vm2216, 0, %v2215
    %v2218 = vsub.s32 32, %v2217
    %v2219 = vshll.u32 %v2210, %v2217
    %v2220 = vshrl.u32 %v2202, %v2218
    %v2221 = vor.u32 %v2219, %v2220
    %v2222 = vsub.s32 4294967266, %v2217
    %v2223 = vadd.s32 %v2222, 127
    %v2224 = vshll.u32 %v2223, 23
    %v2225 = vor.u32 4788187, %v2224
    %v2226 = vand.u32 2147483647, %v2225
    %v2228 = vcvt.s32.f32 %v2221
    %v2229 = vmul.f32 %v2228, %v2226
    %v2230 = vxor.u32 %v2229, 2147483648
    %v2231 = vsel %vm2148, %v2230, %v2229
    %v2232 = vsub.s32 4, %v2208
    %v2233 = vsel %vm2148, %v2232, %v2208
    %v2234 = vsel %vm2147, %v1171, %v2231
    %v2235 = vsel %vm2147, 0, %v2233
    %v2236 = vcosq.f32.pop %v2234
    %v2237 = vsinq.f32.pop %v2234
    %vm2238 = vweird.f32 %v1171
    %v2239 = vadd.s32 %v2235, 3
    %v2240 = vand.u32 %v2239, 3
    %vm2241 = vcmp.lt.s32.totalorder %v2240, 2
    %vm2242 = vcmp.eq.s32.totalorder %v2240, 0
    %v2243 = vxor.u32 %v2237, 2147483648
    %v2244 = vsel %vm2242, %v2236, %v2243
    %vm2245 = vcmp.eq.s32.totalorder %v2240, 2
    %v2246 = vxor.u32 %v2236, 2147483648
    %v2247 = vsel %vm2245, %v2246, %v2237
    %v2248 = vsel %vm2241, %v2244, %v2247
    %v2249 = vsel %vm2238, nan, %v2248
    %v2250 = vand.u32 2147483647, %v1177
    %vm2251 = vcmp.le.f32.partialorder %v2250, 0.7853982
    %vm2252 = vcmp.lt.s32.totalorder %v1177, 0
    %v2253 = vand.u32 %v1177, 2139095040
    %v2254 = vshrl.u32 %v2253, 23
    %v2255 = vsub.s32 %v2254, 127
    %v2256 = vand.u32 2147483647, %v1177
    %v2257 = vand.u32 %v2256, 8388607
    %v2258 = vor.u32 %v2257, 8388608
    %v2259 = vsub.s32 0, %v2258
    %v2260 = vadd.s32 %v2255, 1
    %vm2261 = vcmp.gt.s32.totalorder %v2260, 0
    %v2262 = vsel %vm2261, %v2260, 0
    %v2263 = vshrl.u32 %v2262, 5
    %v2264 = vand.u32 %v2262, 31
    %v2265 = vsub.s32 32, %v2264
    %v2266 = vshrl.u32 683565275, %v2265
    %v2267 = vshll.u32 683565275, %v2264
    %v2268 = vshrl.u32 2475754826, %v2265
    %v2269 = vor.u32 %v2267, %v2268
    %v2270 = vshll.u32 2475754826, %v2264
    %v2271 = vshrl.u32 2131351028, %v2265
    %v2272 = vor.u32 %v2270, %v2271
    %v2273 = vshll.u32 2131351028, %v2264
    %v2274 = vshrl.u32 2102212464, %v2265
    %v2275 = vor.u32 %v2273, %v2274
    %v2276 = vshll.u32 2102212464, %v2264
    %v2277 = vshrl.u32 920167782, %v2265
    %v2278 = vor.u32 %v2276, %v2277
    %v2279 = vshll.u32 920167782, %v2264
    %v2280 = vshrl.u32 1326507024, %v2265
    %v2281 = vor.u32 %v2279, %v2280
    %vm2282 = vcmp.lt.s32.totalorder %v2263, 1
    %vm2283 = vcmp.lt.s32.totalorder %v2263, 2
    %vm2284 = vcmp.lt.s32.totalorder %v2263, 3
    %vm2285 = vcmp.lt.s32.totalorder %v2263, 4
    %v2286 = vsel %vm2282, %v2266, %v2269
    %v2287 = vsel %vm2285, %v2275, 2102212464
    %v2288 = vsel %vm2284, %v2272, %v2287
    %v2289 = vsel %vm2283, %v2286, %v2288
    %v2290 = vsel %vm2282, %v2269, %v2272
    %v2291 = vsel %vm2285, %v2278, 920167782
    %v2292 = vsel %vm2284, %v2275, %v2291
    %v2293 = vsel %vm2283, %v2290, %v2292
    %v2294 = vsel %vm2282, %v2272, %v2275
    %v2295 = vsel %vm2285, %v2281, 1326507024
    %v2296 = vsel %vm2284, %v2278, %v2295
    %v2297 = vsel %vm2283, %v2294, %v2296
    %v2298 = vshll.u32 %v2258, 8
    %v2299 = vmul.u32.u64.compose %v2298, %v2297
    %v2300 = vextract.low.u32 %v2299
    %v2301 = vextract.high.u32 %v2299
    %v2302 = vmul.u32.u64.compose %v2298, %v2293
    %v2303 = vextract.low.u32 %v2302
    %v2304 = vextract.high.u32 %v2302
    %v2305 = vmul.u32 %v2298, %v2289
    %v2306 = vadd.s32 %v2301, %v2303
    %vm2307 = vc.u32 %v2301, %v2303
    %v2308 = vadd.s32 %v2304, 1
    %v2309 = vsel %vm2307, %v2308, %v2304
    %v2310 = vadd.s32 %v2305, %v2309
    %v2311 = vadd.s32 %v2310, 536870912
    %v2312 = vshrl.u32 %v2311, 30
    %v2313 = vshll.u32 %v2312, 30
    %v2314 = vsub.s32 %v2310, %v2313
    %vm2315 = vcmp.lt.s32.totalorder %v2314, 0
    %v2316 = vsub.s32 0, %v2314
    %v2317 = vsel %vm2315, %v2316, %v2314
    %v2318 = vclz %v2317
    %v2319 = vsub.s32 %v2318, 2
    %vm2320 = vcmp.gt.s32.totalorder 0, %v2319
    %v2321 = vsel %vm2320, 0, %v2319
    %v2322 = vsub.s32 32, %v2321
    %v2323 = vshll.u32 %v2314, %v2321
    %v2324 = vshrl.u32 %v2306, %v2322
    %v2325 = vor.u32 %v2323, %v2324
    %v2326 = vsub.s32 4294967266, %v2321
    %v2327 = vadd.s32 %v2326, 127
    %v2328 = vshll.u32 %v2327, 23
    %v2329 = vor.u32 4788187, %v2328
    %v2330 = vand.u32 2147483647, %v2329
    %v2332 = vcvt.s32.f32 %v2325
    %v2333 = vmul.f32 %v2332, %v2330
    %v2334 = vxor.u32 %v2333, 2147483648
    %v2335 = vsel %vm2252, %v2334, %v2333
    %v2336 = vsub.s32 4, %v2312
    %v2337 = vsel %vm2252, %v2336, %v2312
    %v2338 = vsel %vm2251, %v1177, %v2335
    %v2339 = vsel %vm2251, 0, %v2337
    %v2340 = vcosq.f32.pop %v2338
    %v2341 = vsinq.f32.pop %v2338
    %vm2342 = vweird.f32 %v1177
    %v2343 = vadd.s32 %v2339, 3
    %v2344 = vand.u32 %v2343, 3
    %vm2345 = vcmp.lt.s32.totalorder %v2344, 2
    %vm2346 = vcmp.eq.s32.totalorder %v2344, 0
    %v2347 = vxor.u32 %v2341, 2147483648
    %v2348 = vsel %vm2346, %v2340, %v2347
    %vm2349 = vcmp.eq.s32.totalorder %v2344, 2
    %v2350 = vxor.u32 %v2340, 2147483648
    %v2351 = vsel %vm2349, %v2350, %v2341
    %v2352 = vsel %vm2345, %v2348, %v2351
    %v2353 = vsel %vm2342, nan, %v2352
    %v2354 = vand.u32 2147483647, %v1183
    %vm2355 = vcmp.le.f32.partialorder %v2354, 0.7853982
    %vm2356 = vcmp.lt.s32.totalorder %v1183, 0
    %v2357 = vand.u32 %v1183, 2139095040
    %v2358 = vshrl.u32 %v2357, 23
    %v2359 = vsub.s32 %v2358, 127
    %v2360 = vand.u32 2147483647, %v1183
    %v2361 = vand.u32 %v2360, 8388607
    %v2362 = vor.u32 %v2361, 8388608
    %v2363 = vsub.s32 0, %v2362
    %v2364 = vadd.s32 %v2359, 1
    %vm2365 = vcmp.gt.s32.totalorder %v2364, 0
    %v2366 = vsel %vm2365, %v2364, 0
    %v2367 = vshrl.u32 %v2366, 5
    %v2368 = vand.u32 %v2366, 31
    %v2369 = vsub.s32 32, %v2368
    %v2370 = vshrl.u32 683565275, %v2369
    %v2371 = vshll.u32 683565275, %v2368
    %v2372 = vshrl.u32 2475754826, %v2369
    %v2373 = vor.u32 %v2371, %v2372
    %v2374 = vshll.u32 2475754826, %v2368
    %v2375 = vshrl.u32 2131351028, %v2369
    %v2376 = vor.u32 %v2374, %v2375
    %v2377 = vshll.u32 2131351028, %v2368
    %v2378 = vshrl.u32 2102212464, %v2369
    %v2379 = vor.u32 %v2377, %v2378
    %v2380 = vshll.u32 2102212464, %v2368
    %v2381 = vshrl.u32 920167782, %v2369
    %v2382 = vor.u32 %v2380, %v2381
    %v2383 = vshll.u32 920167782, %v2368
    %v2384 = vshrl.u32 1326507024, %v2369
    %v2385 = vor.u32 %v2383, %v2384
    %vm2386 = vcmp.lt.s32.totalorder %v2367, 1
    %vm2387 = vcmp.lt.s32.totalorder %v2367, 2
    %vm2388 = vcmp.lt.s32.totalorder %v2367, 3
    %vm2389 = vcmp.lt.s32.totalorder %v2367, 4
    %v2390 = vsel %vm2386, %v2370, %v2373
    %v2391 = vsel %vm2389, %v2379, 2102212464
    %v2392 = vsel %vm2388, %v2376, %v2391
    %v2393 = vsel %vm2387, %v2390, %v2392
    %v2394 = vsel %vm2386, %v2373, %v2376
    %v2395 = vsel %vm2389, %v2382, 920167782
    %v2396 = vsel %vm2388, %v2379, %v2395
    %v2397 = vsel %vm2387, %v2394, %v2396
    %v2398 = vsel %vm2386, %v2376, %v2379
    %v2399 = vsel %vm2389, %v2385, 1326507024
    %v2400 = vsel %vm2388, %v2382, %v2399
    %v2401 = vsel %vm2387, %v2398, %v2400
    %v2402 = vshll.u32 %v2362, 8
    %v2403 = vmul.u32.u64.compose %v2402, %v2401
    %v2404 = vextract.low.u32 %v2403
    %v2405 = vextract.high.u32 %v2403
    %v2406 = vmul.u32.u64.compose %v2402, %v2397
    %v2407 = vextract.low.u32 %v2406
    %v2408 = vextract.high.u32 %v2406
    %v2409 = vmul.u32 %v2402, %v2393
    %v2410 = vadd.s32 %v2405, %v2407
    %vm2411 = vc.u32 %v2405, %v2407
    %v2412 = vadd.s32 %v2408, 1
    %v2413 = vsel %vm2411, %v2412, %v2408
    %v2414 = vadd.s32 %v2409, %v2413
    %v2415 = vadd.s32 %v2414, 536870912
    %v2416 = vshrl.u32 %v2415, 30
    %v2417 = vshll.u32 %v2416, 30
    %v2418 = vsub.s32 %v2414, %v2417
    %vm2419 = vcmp.lt.s32.totalorder %v2418, 0
    %v2420 = vsub.s32 0, %v2418
    %v2421 = vsel %vm2419, %v2420, %v2418
    %v2422 = vclz %v2421
    %v2423 = vsub.s32 %v2422, 2
    %vm2424 = vcmp.gt.s32.totalorder 0, %v2423
    %v2425 = vsel %vm2424, 0, %v2423
    %v2426 = vsub.s32 32, %v2425
    %v2427 = vshll.u32 %v2418, %v2425
    %v2428 = vshrl.u32 %v2410, %v2426
    %v2429 = vor.u32 %v2427, %v2428
    %v2430 = vsub.s32 4294967266, %v2425
    %v2431 = vadd.s32 %v2430, 127
    %v2432 = vshll.u32 %v2431, 23
    %v2433 = vor.u32 4788187, %v2432
    %v2434 = vand.u32 2147483647, %v2433
    %v2436 = vcvt.s32.f32 %v2429
    %v2437 = vmul.f32 %v2436, %v2434
    %v2438 = vxor.u32 %v2437, 2147483648
    %v2439 = vsel %vm2356, %v2438, %v2437
    %v2440 = vsub.s32 4, %v2416
    %v2441 = vsel %vm2356, %v2440, %v2416
    %v2442 = vsel %vm2355, %v1183, %v2439
    %v2443 = vsel %vm2355, 0, %v2441
    %v2444 = vcosq.f32.pop %v2442
    %v2445 = vsinq.f32.pop %v2442
    %vm2446 = vweird.f32 %v1183
    %v2447 = vadd.s32 %v2443, 3
    %v2448 = vand.u32 %v2447, 3
    %vm2449 = vcmp.lt.s32.totalorder %v2448, 2
    %vm2450 = vcmp.eq.s32.totalorder %v2448, 0
    %v2451 = vxor.u32 %v2445, 2147483648
    %v2452 = vsel %vm2450, %v2444, %v2451
    %vm2453 = vcmp.eq.s32.totalorder %v2448, 2
    %v2454 = vxor.u32 %v2444, 2147483648
    %v2455 = vsel %vm2453, %v2454, %v2445
    %v2456 = vsel %vm2449, %v2452, %v2455
    %v2457 = vsel %vm2446, nan, %v2456
    %v2458 = vand.u32 2147483647, %v1189
    %vm2459 = vcmp.le.f32.partialorder %v2458, 0.7853982
    %vm2460 = vcmp.lt.s32.totalorder %v1189, 0
    %v2461 = vand.u32 %v1189, 2139095040
    %v2462 = vshrl.u32 %v2461, 23
    %v2463 = vsub.s32 %v2462, 127
    %v2464 = vand.u32 2147483647, %v1189
    %v2465 = vand.u32 %v2464, 8388607
    %v2466 = vor.u32 %v2465, 8388608
    %v2467 = vsub.s32 0, %v2466
    %v2468 = vadd.s32 %v2463, 1
    %vm2469 = vcmp.gt.s32.totalorder %v2468, 0
    %v2470 = vsel %vm2469, %v2468, 0
    %v2471 = vshrl.u32 %v2470, 5
    %v2472 = vand.u32 %v2470, 31
    %v2473 = vsub.s32 32, %v2472
    %v2474 = vshrl.u32 683565275, %v2473
    %v2475 = vshll.u32 683565275, %v2472
    %v2476 = vshrl.u32 2475754826, %v2473
    %v2477 = vor.u32 %v2475, %v2476
    %v2478 = vshll.u32 2475754826, %v2472
    %v2479 = vshrl.u32 2131351028, %v2473
    %v2480 = vor.u32 %v2478, %v2479
    %v2481 = vshll.u32 2131351028, %v2472
    %v2482 = vshrl.u32 2102212464, %v2473
    %v2483 = vor.u32 %v2481, %v2482
    %v2484 = vshll.u32 2102212464, %v2472
    %v2485 = vshrl.u32 920167782, %v2473
    %v2486 = vor.u32 %v2484, %v2485
    %v2487 = vshll.u32 920167782, %v2472
    %v2488 = vshrl.u32 1326507024, %v2473
    %v2489 = vor.u32 %v2487, %v2488
    %vm2490 = vcmp.lt.s32.totalorder %v2471, 1
    %vm2491 = vcmp.lt.s32.totalorder %v2471, 2
    %vm2492 = vcmp.lt.s32.totalorder %v2471, 3
    %vm2493 = vcmp.lt.s32.totalorder %v2471, 4
    %v2494 = vsel %vm2490, %v2474, %v2477
    %v2495 = vsel %vm2493, %v2483, 2102212464
    %v2496 = vsel %vm2492, %v2480, %v2495
    %v2497 = vsel %vm2491, %v2494, %v2496
    %v2498 = vsel %vm2490, %v2477, %v2480
    %v2499 = vsel %vm2493, %v2486, 920167782
    %v2500 = vsel %vm2492, %v2483, %v2499
    %v2501 = vsel %vm2491, %v2498, %v2500
    %v2502 = vsel %vm2490, %v2480, %v2483
    %v2503 = vsel %vm2493, %v2489, 1326507024
    %v2504 = vsel %vm2492, %v2486, %v2503
    %v2505 = vsel %vm2491, %v2502, %v2504
    %v2506 = vshll.u32 %v2466, 8
    %v2507 = vmul.u32.u64.compose %v2506, %v2505
    %v2508 = vextract.low.u32 %v2507
    %v2509 = vextract.high.u32 %v2507
    %v2510 = vmul.u32.u64.compose %v2506, %v2501
    %v2511 = vextract.low.u32 %v2510
    %v2512 = vextract.high.u32 %v2510
    %v2513 = vmul.u32 %v2506, %v2497
    %v2514 = vadd.s32 %v2509, %v2511
    %vm2515 = vc.u32 %v2509, %v2511
    %v2516 = vadd.s32 %v2512, 1
    %v2517 = vsel %vm2515, %v2516, %v2512
    %v2518 = vadd.s32 %v2513, %v2517
    %v2519 = vadd.s32 %v2518, 536870912
    %v2520 = vshrl.u32 %v2519, 30
    %v2521 = vshll.u32 %v2520, 30
    %v2522 = vsub.s32 %v2518, %v2521
    %vm2523 = vcmp.lt.s32.totalorder %v2522, 0
    %v2524 = vsub.s32 0, %v2522
    %v2525 = vsel %vm2523, %v2524, %v2522
    %v2526 = vclz %v2525
    %v2527 = vsub.s32 %v2526, 2
    %vm2528 = vcmp.gt.s32.totalorder 0, %v2527
    %v2529 = vsel %vm2528, 0, %v2527
    %v2530 = vsub.s32 32, %v2529
    %v2531 = vshll.u32 %v2522, %v2529
    %v2532 = vshrl.u32 %v2514, %v2530
    %v2533 = vor.u32 %v2531, %v2532
    %v2534 = vsub.s32 4294967266, %v2529
    %v2535 = vadd.s32 %v2534, 127
    %v2536 = vshll.u32 %v2535, 23
    %v2537 = vor.u32 4788187, %v2536
    %v2538 = vand.u32 2147483647, %v2537
    %v2540 = vcvt.s32.f32 %v2533
    %v2541 = vmul.f32 %v2540, %v2538
    %v2542 = vxor.u32 %v2541, 2147483648
    %v2543 = vsel %vm2460, %v2542, %v2541
    %v2544 = vsub.s32 4, %v2520
    %v2545 = vsel %vm2460, %v2544, %v2520
    %v2546 = vsel %vm2459, %v1189, %v2543
    %v2547 = vsel %vm2459, 0, %v2545
    %v2548 = vcosq.f32.pop %v2546
    %v2549 = vsinq.f32.pop %v2546
    %vm2550 = vweird.f32 %v1189
    %v2551 = vadd.s32 %v2547, 3
    %v2552 = vand.u32 %v2551, 3
    %vm2553 = vcmp.lt.s32.totalorder %v2552, 2
    %vm2554 = vcmp.eq.s32.totalorder %v2552, 0
    %v2555 = vxor.u32 %v2549, 2147483648
    %v2556 = vsel %vm2554, %v2548, %v2555
    %vm2557 = vcmp.eq.s32.totalorder %v2552, 2
    %v2558 = vxor.u32 %v2548, 2147483648
    %v2559 = vsel %vm2557, %v2558, %v2549
    %v2560 = vsel %vm2553, %v2556, %v2559
    %v2561 = vsel %vm2550, nan, %v2560
    %v2562 = vand.u32 2147483647, %v1195
    %vm2563 = vcmp.le.f32.partialorder %v2562, 0.7853982
    %vm2564 = vcmp.lt.s32.totalorder %v1195, 0
    %v2565 = vand.u32 %v1195, 2139095040
    %v2566 = vshrl.u32 %v2565, 23
    %v2567 = vsub.s32 %v2566, 127
    %v2568 = vand.u32 2147483647, %v1195
    %v2569 = vand.u32 %v2568, 8388607
    %v2570 = vor.u32 %v2569, 8388608
    %v2571 = vsub.s32 0, %v2570
    %v2572 = vadd.s32 %v2567, 1
    %vm2573 = vcmp.gt.s32.totalorder %v2572, 0
    %v2574 = vsel %vm2573, %v2572, 0
    %v2575 = vshrl.u32 %v2574, 5
    %v2576 = vand.u32 %v2574, 31
    %v2577 = vsub.s32 32, %v2576
    %v2578 = vshrl.u32 683565275, %v2577
    %v2579 = vshll.u32 683565275, %v2576
    %v2580 = vshrl.u32 2475754826, %v2577
    %v2581 = vor.u32 %v2579, %v2580
    %v2582 = vshll.u32 2475754826, %v2576
    %v2583 = vshrl.u32 2131351028, %v2577
    %v2584 = vor.u32 %v2582, %v2583
    %v2585 = vshll.u32 2131351028, %v2576
    %v2586 = vshrl.u32 2102212464, %v2577
    %v2587 = vor.u32 %v2585, %v2586
    %v2588 = vshll.u32 2102212464, %v2576
    %v2589 = vshrl.u32 920167782, %v2577
    %v2590 = vor.u32 %v2588, %v2589
    %v2591 = vshll.u32 920167782, %v2576
    %v2592 = vshrl.u32 1326507024, %v2577
    %v2593 = vor.u32 %v2591, %v2592
    %vm2594 = vcmp.lt.s32.totalorder %v2575, 1
    %vm2595 = vcmp.lt.s32.totalorder %v2575, 2
    %vm2596 = vcmp.lt.s32.totalorder %v2575, 3
    %vm2597 = vcmp.lt.s32.totalorder %v2575, 4
    %v2598 = vsel %vm2594, %v2578, %v2581
    %v2599 = vsel %vm2597, %v2587, 2102212464
    %v2600 = vsel %vm2596, %v2584, %v2599
    %v2601 = vsel %vm2595, %v2598, %v2600
    %v2602 = vsel %vm2594, %v2581, %v2584
    %v2603 = vsel %vm2597, %v2590, 920167782
    %v2604 = vsel %vm2596, %v2587, %v2603
    %v2605 = vsel %vm2595, %v2602, %v2604
    %v2606 = vsel %vm2594, %v2584, %v2587
    %v2607 = vsel %vm2597, %v2593, 1326507024
    %v2608 = vsel %vm2596, %v2590, %v2607
    %v2609 = vsel %vm2595, %v2606, %v2608
    %v2610 = vshll.u32 %v2570, 8
    %v2611 = vmul.u32.u64.compose %v2610, %v2609
    %v2612 = vextract.low.u32 %v2611
    %v2613 = vextract.high.u32 %v2611
    %v2614 = vmul.u32.u64.compose %v2610, %v2605
    %v2615 = vextract.low.u32 %v2614
    %v2616 = vextract.high.u32 %v2614
    %v2617 = vmul.u32 %v2610, %v2601
    %v2618 = vadd.s32 %v2613, %v2615
    %vm2619 = vc.u32 %v2613, %v2615
    %v2620 = vadd.s32 %v2616, 1
    %v2621 = vsel %vm2619, %v2620, %v2616
    %v2622 = vadd.s32 %v2617, %v2621
    %v2623 = vadd.s32 %v2622, 536870912
    %v2624 = vshrl.u32 %v2623, 30
    %v2625 = vshll.u32 %v2624, 30
    %v2626 = vsub.s32 %v2622, %v2625
    %vm2627 = vcmp.lt.s32.totalorder %v2626, 0
    %v2628 = vsub.s32 0, %v2626
    %v2629 = vsel %vm2627, %v2628, %v2626
    %v2630 = vclz %v2629
    %v2631 = vsub.s32 %v2630, 2
    %vm2632 = vcmp.gt.s32.totalorder 0, %v2631
    %v2633 = vsel %vm2632, 0, %v2631
    %v2634 = vsub.s32 32, %v2633
    %v2635 = vshll.u32 %v2626, %v2633
    %v2636 = vshrl.u32 %v2618, %v2634
    %v2637 = vor.u32 %v2635, %v2636
    %v2638 = vsub.s32 4294967266, %v2633
    %v2639 = vadd.s32 %v2638, 127
    %v2640 = vshll.u32 %v2639, 23
    %v2641 = vor.u32 4788187, %v2640
    %v2642 = vand.u32 2147483647, %v2641
    %v2644 = vcvt.s32.f32 %v2637
    %v2645 = vmul.f32 %v2644, %v2642
    %v2646 = vxor.u32 %v2645, 2147483648
    %v2647 = vsel %vm2564, %v2646, %v2645
    %v2648 = vsub.s32 4, %v2624
    %v2649 = vsel %vm2564, %v2648, %v2624
    %v2650 = vsel %vm2563, %v1195, %v2647
    %v2651 = vsel %vm2563, 0, %v2649
    %v2652 = vcosq.f32.pop %v2650
    %v2653 = vsinq.f32.pop %v2650
    %vm2654 = vweird.f32 %v1195
    %v2655 = vadd.s32 %v2651, 3
    %v2656 = vand.u32 %v2655, 3
    %vm2657 = vcmp.lt.s32.totalorder %v2656, 2
    %vm2658 = vcmp.eq.s32.totalorder %v2656, 0
    %v2659 = vxor.u32 %v2653, 2147483648
    %v2660 = vsel %vm2658, %v2652, %v2659
    %vm2661 = vcmp.eq.s32.totalorder %v2656, 2
    %v2662 = vxor.u32 %v2652, 2147483648
    %v2663 = vsel %vm2661, %v2662, %v2653
    %v2664 = vsel %vm2657, %v2660, %v2663
    %v2665 = vsel %vm2654, nan, %v2664
    %v2666 = vand.u32 2147483647, %v1201
    %vm2667 = vcmp.le.f32.partialorder %v2666, 0.7853982
    %vm2668 = vcmp.lt.s32.totalorder %v1201, 0
    %v2669 = vand.u32 %v1201, 2139095040
    %v2670 = vshrl.u32 %v2669, 23
    %v2671 = vsub.s32 %v2670, 127
    %v2672 = vand.u32 2147483647, %v1201
    %v2673 = vand.u32 %v2672, 8388607
    %v2674 = vor.u32 %v2673, 8388608
    %v2675 = vsub.s32 0, %v2674
    %v2676 = vadd.s32 %v2671, 1
    %vm2677 = vcmp.gt.s32.totalorder %v2676, 0
    %v2678 = vsel %vm2677, %v2676, 0
    %v2679 = vshrl.u32 %v2678, 5
    %v2680 = vand.u32 %v2678, 31
    %v2681 = vsub.s32 32, %v2680
    %v2682 = vshrl.u32 683565275, %v2681
    %v2683 = vshll.u32 683565275, %v2680
    %v2684 = vshrl.u32 2475754826, %v2681
    %v2685 = vor.u32 %v2683, %v2684
    %v2686 = vshll.u32 2475754826, %v2680
    %v2687 = vshrl.u32 2131351028, %v2681
    %v2688 = vor.u32 %v2686, %v2687
    %v2689 = vshll.u32 2131351028, %v2680
    %v2690 = vshrl.u32 2102212464, %v2681
    %v2691 = vor.u32 %v2689, %v2690
    %v2692 = vshll.u32 2102212464, %v2680
    %v2693 = vshrl.u32 920167782, %v2681
    %v2694 = vor.u32 %v2692, %v2693
    %v2695 = vshll.u32 920167782, %v2680
    %v2696 = vshrl.u32 1326507024, %v2681
    %v2697 = vor.u32 %v2695, %v2696
    %vm2698 = vcmp.lt.s32.totalorder %v2679, 1
    %vm2699 = vcmp.lt.s32.totalorder %v2679, 2
    %vm2700 = vcmp.lt.s32.totalorder %v2679, 3
    %vm2701 = vcmp.lt.s32.totalorder %v2679, 4
    %v2702 = vsel %vm2698, %v2682, %v2685
    %v2703 = vsel %vm2701, %v2691, 2102212464
    %v2704 = vsel %vm2700, %v2688, %v2703
    %v2705 = vsel %vm2699, %v2702, %v2704
    %v2706 = vsel %vm2698, %v2685, %v2688
    %v2707 = vsel %vm2701, %v2694, 920167782
    %v2708 = vsel %vm2700, %v2691, %v2707
    %v2709 = vsel %vm2699, %v2706, %v2708
    %v2710 = vsel %vm2698, %v2688, %v2691
    %v2711 = vsel %vm2701, %v2697, 1326507024
    %v2712 = vsel %vm2700, %v2694, %v2711
    %v2713 = vsel %vm2699, %v2710, %v2712
    %v2714 = vshll.u32 %v2674, 8
    %v2715 = vmul.u32.u64.compose %v2714, %v2713
    %v2716 = vextract.low.u32 %v2715
    %v2717 = vextract.high.u32 %v2715
    %v2718 = vmul.u32.u64.compose %v2714, %v2709
    %v2719 = vextract.low.u32 %v2718
    %v2720 = vextract.high.u32 %v2718
    %v2721 = vmul.u32 %v2714, %v2705
    %v2722 = vadd.s32 %v2717, %v2719
    %vm2723 = vc.u32 %v2717, %v2719
    %v2724 = vadd.s32 %v2720, 1
    %v2725 = vsel %vm2723, %v2724, %v2720
    %v2726 = vadd.s32 %v2721, %v2725
    %v2727 = vadd.s32 %v2726, 536870912
    %v2728 = vshrl.u32 %v2727, 30
    %v2729 = vshll.u32 %v2728, 30
    %v2730 = vsub.s32 %v2726, %v2729
    %vm2731 = vcmp.lt.s32.totalorder %v2730, 0
    %v2732 = vsub.s32 0, %v2730
    %v2733 = vsel %vm2731, %v2732, %v2730
    %v2734 = vclz %v2733
    %v2735 = vsub.s32 %v2734, 2
    %vm2736 = vcmp.gt.s32.totalorder 0, %v2735
    %v2737 = vsel %vm2736, 0, %v2735
    %v2738 = vsub.s32 32, %v2737
    %v2739 = vshll.u32 %v2730, %v2737
    %v2740 = vshrl.u32 %v2722, %v2738
    %v2741 = vor.u32 %v2739, %v2740
    %v2742 = vsub.s32 4294967266, %v2737
    %v2743 = vadd.s32 %v2742, 127
    %v2744 = vshll.u32 %v2743, 23
    %v2745 = vor.u32 4788187, %v2744
    %v2746 = vand.u32 2147483647, %v2745
    %v2748 = vcvt.s32.f32 %v2741
    %v2749 = vmul.f32 %v2748, %v2746
    %v2750 = vxor.u32 %v2749, 2147483648
    %v2751 = vsel %vm2668, %v2750, %v2749
    %v2752 = vsub.s32 4, %v2728
    %v2753 = vsel %vm2668, %v2752, %v2728
    %v2754 = vsel %vm2667, %v1201, %v2751
    %v2755 = vsel %vm2667, 0, %v2753
    %v2756 = vcosq.f32.pop %v2754
    %v2757 = vsinq.f32.pop %v2754
    %vm2758 = vweird.f32 %v1201
    %v2759 = vadd.s32 %v2755, 3
    %v2760 = vand.u32 %v2759, 3
    %vm2761 = vcmp.lt.s32.totalorder %v2760, 2
    %vm2762 = vcmp.eq.s32.totalorder %v2760, 0
    %v2763 = vxor.u32 %v2757, 2147483648
    %v2764 = vsel %vm2762, %v2756, %v2763
    %vm2765 = vcmp.eq.s32.totalorder %v2760, 2
    %v2766 = vxor.u32 %v2756, 2147483648
    %v2767 = vsel %vm2765, %v2766, %v2757
    %v2768 = vsel %vm2761, %v2764, %v2767
    %v2769 = vsel %vm2758, nan, %v2768
    %v2770 = vand.u32 2147483647, %v1207
    %vm2771 = vcmp.le.f32.partialorder %v2770, 0.7853982
    %vm2772 = vcmp.lt.s32.totalorder %v1207, 0
    %v2773 = vand.u32 %v1207, 2139095040
    %v2774 = vshrl.u32 %v2773, 23
    %v2775 = vsub.s32 %v2774, 127
    %v2776 = vand.u32 2147483647, %v1207
    %v2777 = vand.u32 %v2776, 8388607
    %v2778 = vor.u32 %v2777, 8388608
    %v2779 = vsub.s32 0, %v2778
    %v2780 = vadd.s32 %v2775, 1
    %vm2781 = vcmp.gt.s32.totalorder %v2780, 0
    %v2782 = vsel %vm2781, %v2780, 0
    %v2783 = vshrl.u32 %v2782, 5
    %v2784 = vand.u32 %v2782, 31
    %v2785 = vsub.s32 32, %v2784
    %v2786 = vshrl.u32 683565275, %v2785
    %v2787 = vshll.u32 683565275, %v2784
    %v2788 = vshrl.u32 2475754826, %v2785
    %v2789 = vor.u32 %v2787, %v2788
    %v2790 = vshll.u32 2475754826, %v2784
    %v2791 = vshrl.u32 2131351028, %v2785
    %v2792 = vor.u32 %v2790, %v2791
    %v2793 = vshll.u32 2131351028, %v2784
    %v2794 = vshrl.u32 2102212464, %v2785
    %v2795 = vor.u32 %v2793, %v2794
    %v2796 = vshll.u32 2102212464, %v2784
    %v2797 = vshrl.u32 920167782, %v2785
    %v2798 = vor.u32 %v2796, %v2797
    %v2799 = vshll.u32 920167782, %v2784
    %v2800 = vshrl.u32 1326507024, %v2785
    %v2801 = vor.u32 %v2799, %v2800
    %vm2802 = vcmp.lt.s32.totalorder %v2783, 1
    %vm2803 = vcmp.lt.s32.totalorder %v2783, 2
    %vm2804 = vcmp.lt.s32.totalorder %v2783, 3
    %vm2805 = vcmp.lt.s32.totalorder %v2783, 4
    %v2806 = vsel %vm2802, %v2786, %v2789
    %v2807 = vsel %vm2805, %v2795, 2102212464
    %v2808 = vsel %vm2804, %v2792, %v2807
    %v2809 = vsel %vm2803, %v2806, %v2808
    %v2810 = vsel %vm2802, %v2789, %v2792
    %v2811 = vsel %vm2805, %v2798, 920167782
    %v2812 = vsel %vm2804, %v2795, %v2811
    %v2813 = vsel %vm2803, %v2810, %v2812
    %v2814 = vsel %vm2802, %v2792, %v2795
    %v2815 = vsel %vm2805, %v2801, 1326507024
    %v2816 = vsel %vm2804, %v2798, %v2815
    %v2817 = vsel %vm2803, %v2814, %v2816
    %v2818 = vshll.u32 %v2778, 8
    %v2819 = vmul.u32.u64.compose %v2818, %v2817
    %v2820 = vextract.low.u32 %v2819
    %v2821 = vextract.high.u32 %v2819
    %v2822 = vmul.u32.u64.compose %v2818, %v2813
    %v2823 = vextract.low.u32 %v2822
    %v2824 = vextract.high.u32 %v2822
    %v2825 = vmul.u32 %v2818, %v2809
    %v2826 = vadd.s32 %v2821, %v2823
    %vm2827 = vc.u32 %v2821, %v2823
    %v2828 = vadd.s32 %v2824, 1
    %v2829 = vsel %vm2827, %v2828, %v2824
    %v2830 = vadd.s32 %v2825, %v2829
    %v2831 = vadd.s32 %v2830, 536870912
    %v2832 = vshrl.u32 %v2831, 30
    %v2833 = vshll.u32 %v2832, 30
    %v2834 = vsub.s32 %v2830, %v2833
    %vm2835 = vcmp.lt.s32.totalorder %v2834, 0
    %v2836 = vsub.s32 0, %v2834
    %v2837 = vsel %vm2835, %v2836, %v2834
    %v2838 = vclz %v2837
    %v2839 = vsub.s32 %v2838, 2
    %vm2840 = vcmp.gt.s32.totalorder 0, %v2839
    %v2841 = vsel %vm2840, 0, %v2839
    %v2842 = vsub.s32 32, %v2841
    %v2843 = vshll.u32 %v2834, %v2841
    %v2844 = vshrl.u32 %v2826, %v2842
    %v2845 = vor.u32 %v2843, %v2844
    %v2846 = vsub.s32 4294967266, %v2841
    %v2847 = vadd.s32 %v2846, 127
    %v2848 = vshll.u32 %v2847, 23
    %v2849 = vor.u32 4788187, %v2848
    %v2850 = vand.u32 2147483647, %v2849
    %v2852 = vcvt.s32.f32 %v2845
    %v2853 = vmul.f32 %v2852, %v2850
    %v2854 = vxor.u32 %v2853, 2147483648
    %v2855 = vsel %vm2772, %v2854, %v2853
    %v2856 = vsub.s32 4, %v2832
    %v2857 = vsel %vm2772, %v2856, %v2832
    %v2858 = vsel %vm2771, %v1207, %v2855
    %v2859 = vsel %vm2771, 0, %v2857
    %v2860 = vcosq.f32.pop %v2858
    %v2861 = vsinq.f32.pop %v2858
    %vm2862 = vweird.f32 %v1207
    %v2863 = vadd.s32 %v2859, 3
    %v2864 = vand.u32 %v2863, 3
    %vm2865 = vcmp.lt.s32.totalorder %v2864, 2
    %vm2866 = vcmp.eq.s32.totalorder %v2864, 0
    %v2867 = vxor.u32 %v2861, 2147483648
    %v2868 = vsel %vm2866, %v2860, %v2867
    %vm2869 = vcmp.eq.s32.totalorder %v2864, 2
    %v2870 = vxor.u32 %v2860, 2147483648
    %v2871 = vsel %vm2869, %v2870, %v2861
    %v2872 = vsel %vm2865, %v2868, %v2871
    %v2873 = vsel %vm2862, nan, %v2872
    %2874 = vst [vmem:[#allocation7] sm:$0xff] %v1313
    %2875 = vst [vmem:[#allocation7 + $0x8] sm:$0xff] %v1417
    %2876 = vst [vmem:[#allocation7 + $0x10] sm:$0xff] %v1521
    %2877 = vst [vmem:[#allocation7 + $0x18] sm:$0xff] %v1625
    %2878 = vst [vmem:[#allocation7 + $0x20] sm:$0xff] %v1729
    %2879 = vst [vmem:[#allocation7 + $0x28] sm:$0xff] %v1833
    %2880 = vst [vmem:[#allocation7 + $0x30] sm:$0xff] %v1937
    %2881 = vst [vmem:[#allocation7 + $0x38] sm:$0xff] %v2041
    %2882 = vst [vmem:[#allocation7 + $0x40] sm:$0xff] %v2145
    %2883 = vst [vmem:[#allocation7 + $0x48] sm:$0xff] %v2249
    %2884 = vst [vmem:[#allocation7 + $0x50] sm:$0xff] %v2353
    %2885 = vst [vmem:[#allocation7 + $0x58] sm:$0xff] %v2457
    %2886 = vst [vmem:[#allocation7 + $0x60] sm:$0xff] %v2561
    %2887 = vst [vmem:[#allocation7 + $0x68] sm:$0xff] %v2665
    %2888 = vst [vmem:[#allocation7 + $0x70] sm:$0xff] %v2769
    %2889 = vst [vmem:[#allocation7 + $0x78] sm:$0xff] %v2873
    // Predicated region
    $region18: #{tpu_custom_call.1} parent=1 // pred_check
      _
    $region19: #{tpu_custom_call.1} parent=1 // pred_check_branch
      %2891 = sbr.rel (0) target = $region21
    $region20: #{tpu_custom_call.1} parent=1 // pred_region
      %s2893 = ssub.s32 2048, 2048
      %2894 = vsyncadd [#allocation4], %s2893
      %s2895 = sshll.u32 [#allocation7], 4
      %s2896 = int_to_ptr.vmem [resolvable:$true] %s2895
      %2901 = dma.vmem_to_hbm [thread:$0]  %s2896, 2048, %s2, [#allocation4], 128, 128, 8
    $region21: #{tpu_custom_call.1} parent=1 // pred_fallthru
      _
    // Predicated region
    $region22: #{tpu_custom_call.1} parent=1 // pred_check
      _
    $region23: #{tpu_custom_call.1} parent=1 // pred_check_branch
      %2903 = sbr.rel (0) target = $region25
    $region24: #{tpu_custom_call.1} parent=1 // pred_region
      %2904 = dma.done [#allocation4], 2048
    $region25: #{tpu_custom_call.1} parent=1 // pred_fallthru
      _
    %2905 = vsyncpa [#allocation3], 1
    %2906 = vsyncpa [#allocation6], 1
    %2907 = vsyncpa [#allocation4], 1

</llo_original>
